<compile_context>
chip_gen: v7x
topology: tpu7x:2x2x1
jax: 0.10.0
libtpu: 0.0.40
codegen_flags: <defaults>
</compile_context>

<pallas_src>
import functools
import math

import jax
import jax.numpy as jnp
from jax.experimental import pallas as pl
from jax.experimental.pallas import tpu as pltpu


# ------------------------------ kernel core ---------------------------------

def _attention_core(qb, kb, vb, wq, bq, wk, bk, wv, bv, wo, bo):
    """Head-batched attention for a single batch element.

    qb/kb/vb : (H, T, D)   bf16  input activations broadcast over the head axis
    wq/wk/wv : (H, d_k, D) bf16  per-head projection weights, PyTorch [out, in]
                                 orientation; 1/sqrt(d_k) folded into wq
    bq/bk/bv : (H, 1, d_k) f32   per-head biases (scale folded into bq)
    wo       : (H, D, d_k) bf16  per-head slabs of the output projection
    bo       : (1, D)      f32
    returns  : (T, D)      f32
    """
    f32, bf16 = jnp.float32, jnp.bfloat16

    # Per-head projections: one batched MXU contraction per tensor (leading
    # batch dim = heads). No activation slicing / reshaping / concatenation.
    q = jnp.einsum("htd,hkd->htk", qb, wq, preferred_element_type=f32) + bq  # (H,T,dk)
    k = jnp.einsum("htd,hkd->htk", kb, wk, preferred_element_type=f32) + bk
    v = jnp.einsum("htd,hkd->htk", vb, wv, preferred_element_type=f32) + bv

    # Scores: scale already folded into wq/bq. bf16 MXU inputs, f32 accumulate.
    s = jnp.einsum("hqd,hkd->hqk", q.astype(bf16), k.astype(bf16),
                   preferred_element_type=f32)                                # (H,T,T)

    # Stable softmax, kept unnormalized; elementwise math in f32 (v5e-safe).
    s = s - jnp.max(s, axis=-1, keepdims=True)
    p = jnp.exp(s)
    l = jnp.sum(p, axis=-1, keepdims=True)                                    # (H,T,1)

    # Unnormalized context, then scale the small (H,T,dk) result with an EUP
    # approximate reciprocal instead of dividing the (H,T,T) score tensor.
    ctx = jnp.einsum("hqk,hkd->hqd", p.astype(bf16), v.astype(bf16),
                     preferred_element_type=f32)                              # (H,T,dk)
    ctx = ctx * pl.reciprocal(l, approx=True)
    # Dropout = identity (eval mode).

    # Output projection: batched per-head slab matmul, reduced over heads.
    out_h = jnp.einsum("hqd,hed->hqe", ctx.astype(bf16), wo,
                       preferred_element_type=f32)                            # (H,T,D)
    return jnp.sum(out_h, axis=0) + bo                                        # (T,D)


def _mha_self_kernel(x_ref, wq, bq, wk, bk, wv, bv, wo, bo, o_ref, *, num_heads):
    """Self-attention fast path (q = k = v = x): input DMA'd once."""
    T, D = x_ref.shape[1], x_ref.shape[2]
    xb = jnp.broadcast_to(x_ref[0].astype(jnp.bfloat16), (num_heads, T, D))
    o_ref[0] = _attention_core(xb, xb, xb,
                               wq[...], bq[...], wk[...], bk[...],
                               wv[...], bv[...], wo[...], bo[...])


def _mha_general_kernel(q_ref, k_ref, v_ref, wq, bq, wk, bk, wv, bv, wo, bo,
                        o_ref, *, num_heads):
    """General path (distinct q / k / v inputs), still one fused kernel."""
    T, D = q_ref.shape[1], q_ref.shape[2]

    def bcast(r):
        return jnp.broadcast_to(r[0].astype(jnp.bfloat16), (num_heads, T, D))

    o_ref[0] = _attention_core(bcast(q_ref), bcast(k_ref), bcast(v_ref),
                               wq[...], bq[...], wk[...], bk[...],
                               wv[...], bv[...], wo[...], bo[...])


# --------------------------------- wrappers ----------------------------------

_WEIGHT_NAMES = ("wq", "bq", "wk", "bk", "wv", "bv", "wo", "bo")


def _resident_spec(arr):
    """Constant block index across the batch grid axis -> the weight block stays
    VMEM-resident instead of being re-DMA'd every grid step."""
    zero = (0,) * arr.ndim
    return pl.BlockSpec(arr.shape, lambda b, _zero=zero: _zero)


def _cost_estimate(B, T, D, H, n_act_inputs):
    d_k = D // H
    flops = B * (3 * 2 * T * D * D        # q/k/v projections
                 + 2 * 2 * H * T * T * d_k  # scores + context
                 + 2 * T * D * D)          # output projection
    transcendentals = B * (H * T * T + H * T)          # exp + reciprocal
    weight_bytes = 4 * D * D * 2 + 4 * D * 4           # bf16 weights + f32 biases
    act_bytes = (n_act_inputs + 1) * B * T * D * 4     # f32 activations in/out
    return pl.CostEstimate(flops=flops, transcendentals=transcendentals,
                           bytes_accessed=act_bytes + weight_bytes)


def mha_self_attention(x, kparams, *, num_heads):
    """MultiHeadAttention.forward(x, x, x), eval mode, mask=None."""
    B, T, D = x.shape
    assert D % num_heads == 0
    act_spec = pl.BlockSpec((1, T, D), lambda b: (b, 0, 0))
    w_specs = [_resident_spec(kparams[n]) for n in _WEIGHT_NAMES]
    w_args = [kparams[n] for n in _WEIGHT_NAMES]
    return pl.pallas_call(
        functools.partial(_mha_self_kernel, num_heads=num_heads),
        out_shape=jax.ShapeDtypeStruct((B, T, D), jnp.float32),
        grid=(B,),
        in_specs=[act_spec] + w_specs,
        out_specs=pl.BlockSpec((1, T, D), lambda b: (b, 0, 0)),
        compiler_params=pltpu.CompilerParams(dimension_semantics=("parallel",)),
        cost_estimate=_cost_estimate(B, T, D, num_heads, 1),
    )(x, *w_args)


def mha_forward(q, k, v, kparams, *, num_heads):
    """MultiHeadAttention.forward(q, k, v), eval mode, mask=None."""
    B, T, D = q.shape
    assert q.shape == k.shape == v.shape
    assert D % num_heads == 0
    act_spec = pl.BlockSpec((1, T, D), lambda b: (b, 0, 0))
    w_specs = [_resident_spec(kparams[n]) for n in _WEIGHT_NAMES]
    w_args = [kparams[n] for n in _WEIGHT_NAMES]
    return pl.pallas_call(
        functools.partial(_mha_general_kernel, num_heads=num_heads),
        out_shape=jax.ShapeDtypeStruct((B, T, D), jnp.float32),
        grid=(B,),
        in_specs=[act_spec, act_spec, act_spec] + w_specs,
        out_specs=pl.BlockSpec((1, T, D), lambda b: (b, 0, 0)),
        compiler_params=pltpu.CompilerParams(dimension_semantics=("parallel",)),
        cost_estimate=_cost_estimate(B, T, D, num_heads, 3),
    )(q, k, v, *w_args)


# -------------------------------- parameters ---------------------------------

def init_params(key, d_model):
    """Logical f32 parameters, matching the PyTorch module's layout & init."""
    kq, kk, kv, ko, kb = jax.random.split(key, 5)
    limit = math.sqrt(6.0 / (2.0 * d_model))            # xavier_uniform

    def xavier(k):  # PyTorch Linear weight layout: [out_features, in_features]
        return jax.random.uniform(k, (d_model, d_model), jnp.float32, -limit, limit)

    bb = 1.0 / math.sqrt(d_model)                        # nn.Linear default bias init
    bqk, bkk, bvk, bok = jax.random.split(kb, 4)
    return {
        "wq": xavier(kq), "wk": xavier(kk), "wv": xavier(kv), "wo": xavier(ko),
        "bq": jax.random.uniform(bqk, (d_model,), jnp.float32, -bb, bb),
        "bk": jax.random.uniform(bkk, (d_model,), jnp.float32, -bb, bb),
        "bv": jax.random.uniform(bvk, (d_model,), jnp.float32, -bb, bb),
        "bo": jax.random.uniform(bok, (d_model,), jnp.float32, -bb, bb),
    }


def pack_params(params, num_heads):
    """Host-side (free) repack: per-head head-major weights, bf16 for the MXU,
    1/sqrt(d_k) folded into the Q projection."""
    D = params["wq"].shape[0]
    d_k = D // num_heads
    scale = 1.0 / math.sqrt(d_k)

    def per_head(w):                      # [D_out, D_in] -> (H, d_k, D_in)
        return w.reshape(num_heads, d_k, D)

    return {
        "wq": (per_head(params["wq"]) * scale).astype(jnp.bfloat16),
        "wk": per_head(params["wk"]).astype(jnp.bfloat16),
        "wv": per_head(params["wv"]).astype(jnp.bfloat16),
        "bq": (params["bq"].reshape(num_heads, 1, d_k) * scale),
        "bk": params["bk"].reshape(num_heads, 1, d_k),
        "bv": params["bv"].reshape(num_heads, 1, d_k),
        # wo_h[h, e, d] = wo[e, h*d_k + d]
        "wo": params["wo"].reshape(D, num_heads, d_k).transpose(1, 0, 2).astype(jnp.bfloat16),
        "bo": params["bo"].reshape(1, D),
    }


# --------------------------- pure-JAX f32 reference ---------------------------

def mha_reference(q, k, v, params, *, num_heads):
    """Exact f32 mirror of the PyTorch module (eval mode, mask=None)."""
    B, T, D = q.shape
    d_k = D // num_heads

    def linear(x, w, b):                  # PyTorch Linear: x @ W^T + b
        return jnp.einsum("btd,ed->bte", x, w) + b

    def split(x):                         # (B,T,D) -> (B,H,T,d_k)
        return x.reshape(B, T, num_heads, d_k).transpose(0, 2, 1, 3)

    qh = split(linear(q, params["wq"], params["bq"]))
    kh = split(linear(k, params["wk"], params["bk"]))
    vh = split(linear(v, params["wv"], params["bv"]))
    s = jnp.einsum("bhqd,bhkd->bhqk", qh, kh) / math.sqrt(d_k)
    p = jax.nn.softmax(s, axis=-1)        # dropout = identity in eval mode
    ctx = jnp.einsum("bhqk,bhkd->bhqd", p, vh)
    ctx = ctx.transpose(0, 2, 1, 3).reshape(B, T, D)
    return linear(ctx, params["wo"], params["bo"])


# ----------------------------------- main -------------------------------------

if __name__ == "__main__":
    batch, seq_len, d_model, num_heads = 2, 8, 128, 4     # d_k = 32; lane-dense D

    key = jax.random.PRNGKey(0)
    kx, kp = jax.random.split(key)
    x = jax.random.normal(kx, (batch, seq_len, d_model), jnp.float32)
    params = init_params(kp, d_model)
    kparams = pack_params(params, num_heads)

    self_fn = jax.jit(functools.partial(mha_self_attention, num_heads=num_heads))
    gen_fn = jax.jit(functools.partial(mha_forward, num_heads=num_heads))

    out_self = self_fn(x, kparams)          # self-attention path
    out_gen = gen_fn(x, x, x, kparams)      # general (distinct q/k/v refs) path
    jax.block_until_ready((out_self, out_gen))

    ref = mha_reference(x, x, x, params, num_heads=num_heads)

    assert out_self.shape == (batch, seq_len, d_model)
    assert out_gen.shape == (batch, seq_len, d_model)
    assert bool(jnp.all(jnp.isfinite(out_self)))
    assert bool(jnp.all(jnp.isfinite(out_gen)))
    # Both kernel paths compute identical math -> must agree tightly.
    assert bool(jnp.allclose(out_self, out_gen, atol=1e-5, rtol=1e-5))
    # bf16 MXU operands + approx reciprocal -> relaxed tolerance vs f32 reference.
    assert bool(jnp.allclose(out_self, ref, atol=5e-2, rtol=5e-2))
    assert bool(jnp.allclose(out_gen, ref, atol=5e-2, rtol=5e-2))
    print("KERNEL_OK")
</pallas_src>

<mosaic_0001>
module attributes {stable_mosaic.version = 11 : i64} {
  func.func @_mha_self_kernel(%arg0: i32, %arg1: memref<1x8x128xf32, #tpu.memory_space<vmem>>, %arg2: memref<4x32x128xbf16, #tpu.memory_space<vmem>>, %arg3: memref<4x1x32xf32, #tpu.memory_space<vmem>>, %arg4: memref<4x32x128xbf16, #tpu.memory_space<vmem>>, %arg5: memref<4x1x32xf32, #tpu.memory_space<vmem>>, %arg6: memref<4x32x128xbf16, #tpu.memory_space<vmem>>, %arg7: memref<4x1x32xf32, #tpu.memory_space<vmem>>, %arg8: memref<4x128x32xbf16, #tpu.memory_space<vmem>>, %arg9: memref<1x128xf32, #tpu.memory_space<vmem>>, %arg10: memref<1x8x128xf32, #tpu.memory_space<vmem>>) attributes {dimension_semantics = [#tpu.dimension_semantics<parallel>], iteration_bounds = array<i64: 2>, scalar_prefetch = 0 : i64, scratch_operands = 0 : i64, tpu.core_type = #tpu.core_type<tc>, window_params = [{transform_indices = @transform_0, window_bounds = array<i64: 1, 8, 128>}, {pipeline_mode = #tpu.pipeline_mode<synchronous>, transform_indices = @transform_1, window_bounds = array<i64: 4, 32, 128>}, {pipeline_mode = #tpu.pipeline_mode<synchronous>, transform_indices = @transform_2, window_bounds = array<i64: 4, 1, 32>}, {pipeline_mode = #tpu.pipeline_mode<synchronous>, transform_indices = @transform_3, window_bounds = array<i64: 4, 32, 128>}, {pipeline_mode = #tpu.pipeline_mode<synchronous>, transform_indices = @transform_4, window_bounds = array<i64: 4, 1, 32>}, {pipeline_mode = #tpu.pipeline_mode<synchronous>, transform_indices = @transform_5, window_bounds = array<i64: 4, 32, 128>}, {pipeline_mode = #tpu.pipeline_mode<synchronous>, transform_indices = @transform_6, window_bounds = array<i64: 4, 1, 32>}, {pipeline_mode = #tpu.pipeline_mode<synchronous>, transform_indices = @transform_7, window_bounds = array<i64: 4, 128, 32>}, {pipeline_mode = #tpu.pipeline_mode<synchronous>, transform_indices = @transform_8, window_bounds = array<i64: 1, 128>}, {transform_indices = @transform_9, window_bounds = array<i64: 1, 8, 128>}]} {
    %c0 = arith.constant 0 : index
    %c0_0 = arith.constant 0 : index
    %c0_1 = arith.constant 0 : index
    %0 = vector.load %arg1[%c0, %c0_0, %c0_1] : memref<1x8x128xf32, #tpu.memory_space<vmem>>, vector<1x8x128xf32>
    %1 = vector.shape_cast %0 : vector<1x8x128xf32> to vector<8x128xf32>
    %2 = arith.truncf %1 : vector<8x128xf32> to vector<8x128xbf16>
    %3 = vector.shape_cast %2 : vector<8x128xbf16> to vector<1x8x128xbf16>
    %4 = vector.broadcast %3 : vector<1x8x128xbf16> to vector<4x8x128xbf16>
    %c0_2 = arith.constant 0 : index
    %c0_3 = arith.constant 0 : index
    %c0_4 = arith.constant 0 : index
    %5 = vector.load %arg2[%c0_2, %c0_3, %c0_4] : memref<4x32x128xbf16, #tpu.memory_space<vmem>>, vector<4x32x128xbf16>
    %c0_5 = arith.constant 0 : index
    %c0_6 = arith.constant 0 : index
    %c0_7 = arith.constant 0 : index
    %6 = vector.load %arg3[%c0_5, %c0_6, %c0_7] : memref<4x1x32xf32, #tpu.memory_space<vmem>>, vector<4x1x32xf32>
    %c0_8 = arith.constant 0 : index
    %c0_9 = arith.constant 0 : index
    %c0_10 = arith.constant 0 : index
    %7 = vector.load %arg4[%c0_8, %c0_9, %c0_10] : memref<4x32x128xbf16, #tpu.memory_space<vmem>>, vector<4x32x128xbf16>
    %c0_11 = arith.constant 0 : index
    %c0_12 = arith.constant 0 : index
    %c0_13 = arith.constant 0 : index
    %8 = vector.load %arg5[%c0_11, %c0_12, %c0_13] : memref<4x1x32xf32, #tpu.memory_space<vmem>>, vector<4x1x32xf32>
    %c0_14 = arith.constant 0 : index
    %c0_15 = arith.constant 0 : index
    %c0_16 = arith.constant 0 : index
    %9 = vector.load %arg6[%c0_14, %c0_15, %c0_16] : memref<4x32x128xbf16, #tpu.memory_space<vmem>>, vector<4x32x128xbf16>
    %c0_17 = arith.constant 0 : index
    %c0_18 = arith.constant 0 : index
    %c0_19 = arith.constant 0 : index
    %10 = vector.load %arg7[%c0_17, %c0_18, %c0_19] : memref<4x1x32xf32, #tpu.memory_space<vmem>>, vector<4x1x32xf32>
    %c0_20 = arith.constant 0 : index
    %c0_21 = arith.constant 0 : index
    %c0_22 = arith.constant 0 : index
    %11 = vector.load %arg8[%c0_20, %c0_21, %c0_22] : memref<4x128x32xbf16, #tpu.memory_space<vmem>>, vector<4x128x32xbf16>
    %c0_23 = arith.constant 0 : index
    %c0_24 = arith.constant 0 : index
    %12 = vector.load %arg9[%c0_23, %c0_24] : memref<1x128xf32, #tpu.memory_space<vmem>>, vector<1x128xf32>
    "tpu.trace_start"() <{level = 10 : i32, message = "htd,hkd->htk"}> : () -> ()
    %cst = arith.constant dense<0.000000e+00> : vector<4x8x32xf32>
    %13 = tpu.matmul %4, %5, %cst {dimension_numbers = #tpu.dot_dimension_numbers<[2], [2], [1], [1], [0, 0, 0, 1, 1, 1], [0], [0]>} : vector<4x8x128xbf16>, vector<4x32x128xbf16>, vector<4x8x32xf32> -> vector<4x8x32xf32>
    "tpu.trace_stop"() : () -> ()
    %14 = vector.broadcast %6 : vector<4x1x32xf32> to vector<4x8x32xf32>
    %15 = arith.addf %13, %14 : vector<4x8x32xf32>
    "tpu.trace_start"() <{level = 10 : i32, message = "htd,hkd->htk"}> : () -> ()
    %cst_25 = arith.constant dense<0.000000e+00> : vector<4x8x32xf32>
    %16 = tpu.matmul %4, %7, %cst_25 {dimension_numbers = #tpu.dot_dimension_numbers<[2], [2], [1], [1], [0, 0, 0, 1, 1, 1], [0], [0]>} : vector<4x8x128xbf16>, vector<4x32x128xbf16>, vector<4x8x32xf32> -> vector<4x8x32xf32>
    "tpu.trace_stop"() : () -> ()
    %17 = vector.broadcast %8 : vector<4x1x32xf32> to vector<4x8x32xf32>
    %18 = arith.addf %16, %17 : vector<4x8x32xf32>
    "tpu.trace_start"() <{level = 10 : i32, message = "htd,hkd->htk"}> : () -> ()
    %cst_26 = arith.constant dense<0.000000e+00> : vector<4x8x32xf32>
    %19 = tpu.matmul %4, %9, %cst_26 {dimension_numbers = #tpu.dot_dimension_numbers<[2], [2], [1], [1], [0, 0, 0, 1, 1, 1], [0], [0]>} : vector<4x8x128xbf16>, vector<4x32x128xbf16>, vector<4x8x32xf32> -> vector<4x8x32xf32>
    "tpu.trace_stop"() : () -> ()
    %20 = vector.broadcast %10 : vector<4x1x32xf32> to vector<4x8x32xf32>
    %21 = arith.addf %19, %20 : vector<4x8x32xf32>
    %22 = arith.truncf %15 : vector<4x8x32xf32> to vector<4x8x32xbf16>
    %23 = arith.truncf %18 : vector<4x8x32xf32> to vector<4x8x32xbf16>
    "tpu.trace_start"() <{level = 10 : i32, message = "hqd,hkd->hqk"}> : () -> ()
    %cst_27 = arith.constant dense<0.000000e+00> : vector<4x8x8xf32>
    %24 = tpu.matmul %22, %23, %cst_27 {dimension_numbers = #tpu.dot_dimension_numbers<[2], [2], [1], [1], [0, 0, 0, 1, 1, 1], [0], [0]>} : vector<4x8x32xbf16>, vector<4x8x32xbf16>, vector<4x8x8xf32> -> vector<4x8x8xf32>
    "tpu.trace_stop"() : () -> ()
    %cst_28 = arith.constant dense<0xFF800000> : vector<4x8xf32>
    %25 = vector.multi_reduction <maximumf>, %24, %cst_28 [2] : vector<4x8x8xf32> to vector<4x8xf32>
    %26 = vector.shape_cast %25 : vector<4x8xf32> to vector<4x8x1xf32>
    %27 = vector.broadcast %26 : vector<4x8x1xf32> to vector<4x8x8xf32>
    %28 = arith.subf %24, %27 : vector<4x8x8xf32>
    %29 = math.exp %28 : vector<4x8x8xf32>
    %cst_29 = arith.constant dense<0.000000e+00> : vector<4x8xf32>
    %30 = vector.multi_reduction <add>, %29, %cst_29 [2] : vector<4x8x8xf32> to vector<4x8xf32>
    %31 = vector.shape_cast %30 : vector<4x8xf32> to vector<4x8x1xf32>
    %32 = arith.truncf %29 : vector<4x8x8xf32> to vector<4x8x8xbf16>
    %33 = arith.truncf %21 : vector<4x8x32xf32> to vector<4x8x32xbf16>
    "tpu.trace_start"() <{level = 10 : i32, message = "hqk,hkd->hqd"}> : () -> ()
    %cst_30 = arith.constant dense<0.000000e+00> : vector<4x8x32xf32>
    %34 = tpu.matmul %32, %33, %cst_30 {dimension_numbers = #tpu.dot_dimension_numbers<[2], [1], [1], [2], [0, 0, 0, 1, 1, 2], [0], [0]>} : vector<4x8x8xbf16>, vector<4x8x32xbf16>, vector<4x8x32xf32> -> vector<4x8x32xf32>
    "tpu.trace_stop"() : () -> ()
    %35 = tpu.reciprocal %31 {approx = true} : vector<4x8x1xf32> -> vector<4x8x1xf32>
    %36 = vector.broadcast %35 : vector<4x8x1xf32> to vector<4x8x32xf32>
    %37 = arith.mulf %34, %36 : vector<4x8x32xf32>
    %38 = arith.truncf %37 : vector<4x8x32xf32> to vector<4x8x32xbf16>
    "tpu.trace_start"() <{level = 10 : i32, message = "hqd,hed->hqe"}> : () -> ()
    %cst_31 = arith.constant dense<0.000000e+00> : vector<4x8x128xf32>
    %39 = tpu.matmul %38, %11, %cst_31 {dimension_numbers = #tpu.dot_dimension_numbers<[2], [2], [1], [1], [0, 0, 0, 1, 1, 1], [0], [0]>} : vector<4x8x32xbf16>, vector<4x128x32xbf16>, vector<4x8x128xf32> -> vector<4x8x128xf32>
    "tpu.trace_stop"() : () -> ()
    %cst_32 = arith.constant dense<0.000000e+00> : vector<8x128xf32>
    %40 = vector.multi_reduction <add>, %39, %cst_32 [0] : vector<4x8x128xf32> to vector<8x128xf32>
    %41 = vector.broadcast %12 : vector<1x128xf32> to vector<8x128xf32>
    %42 = arith.addf %40, %41 : vector<8x128xf32>
    %c0_33 = arith.constant 0 : index
    %c0_34 = arith.constant 0 : index
    %c0_35 = arith.constant 0 : index
    %43 = vector.load %arg10[%c0_33, %c0_34, %c0_35] : memref<1x8x128xf32, #tpu.memory_space<vmem>>, vector<1x8x128xf32>
    %44 = vector.shape_cast %43 : vector<1x8x128xf32> to vector<8x128xf32>
    %45 = vector.shape_cast %42 : vector<8x128xf32> to vector<1x8x128xf32>
    tpu.vector_store %arg10[%c0_33, %c0_34, %c0_35], %45 {strides = array<i32>} : memref<1x8x128xf32, #tpu.memory_space<vmem>>, vector<1x8x128xf32>,
    return
  }
  func.func @transform_0(%arg0: i32) -> (i32, i32, i32) {
    %c0_i32 = arith.constant 0 : i32
    %c0_i32_0 = arith.constant 0 : i32
    %c0_i32_1 = arith.constant 0 : i32
    return %arg0, %c0_i32, %c0_i32_0 : i32, i32, i32
  }
  func.func @transform_1(%arg0: i32) -> (i32, i32, i32) {
    %c0_i32 = arith.constant 0 : i32
    %c0_i32_0 = arith.constant 0 : i32
    %c0_i32_1 = arith.constant 0 : i32
    %c0_i32_2 = arith.constant 0 : i32
    return %c0_i32, %c0_i32_0, %c0_i32_1 : i32, i32, i32
  }
  func.func @transform_2(%arg0: i32) -> (i32, i32, i32) {
    %c0_i32 = arith.constant 0 : i32
    %c0_i32_0 = arith.constant 0 : i32
    %c0_i32_1 = arith.constant 0 : i32
    %c0_i32_2 = arith.constant 0 : i32
    return %c0_i32, %c0_i32_0, %c0_i32_1 : i32, i32, i32
  }
  func.func @transform_3(%arg0: i32) -> (i32, i32, i32) {
    %c0_i32 = arith.constant 0 : i32
    %c0_i32_0 = arith.constant 0 : i32
    %c0_i32_1 = arith.constant 0 : i32
    %c0_i32_2 = arith.constant 0 : i32
    return %c0_i32, %c0_i32_0, %c0_i32_1 : i32, i32, i32
  }
  func.func @transform_4(%arg0: i32) -> (i32, i32, i32) {
    %c0_i32 = arith.constant 0 : i32
    %c0_i32_0 = arith.constant 0 : i32
    %c0_i32_1 = arith.constant 0 : i32
    %c0_i32_2 = arith.constant 0 : i32
    return %c0_i32, %c0_i32_0, %c0_i32_1 : i32, i32, i32
  }
  func.func @transform_5(%arg0: i32) -> (i32, i32, i32) {
    %c0_i32 = arith.constant 0 : i32
    %c0_i32_0 = arith.constant 0 : i32
    %c0_i32_1 = arith.constant 0 : i32
    %c0_i32_2 = arith.constant 0 : i32
    return %c0_i32, %c0_i32_0, %c0_i32_1 : i32, i32, i32
  }
  func.func @transform_6(%arg0: i32) -> (i32, i32, i32) {
    %c0_i32 = arith.constant 0 : i32
    %c0_i32_0 = arith.constant 0 : i32
    %c0_i32_1 = arith.constant 0 : i32
    %c0_i32_2 = arith.constant 0 : i32
    return %c0_i32, %c0_i32_0, %c0_i32_1 : i32, i32, i32
  }
  func.func @transform_7(%arg0: i32) -> (i32, i32, i32) {
    %c0_i32 = arith.constant 0 : i32
    %c0_i32_0 = arith.constant 0 : i32
    %c0_i32_1 = arith.constant 0 : i32
    %c0_i32_2 = arith.constant 0 : i32
    return %c0_i32, %c0_i32_0, %c0_i32_1 : i32, i32, i32
  }
  func.func @transform_8(%arg0: i32) -> (i32, i32) {
    %c0_i32 = arith.constant 0 : i32
    %c0_i32_0 = arith.constant 0 : i32
    %c0_i32_1 = arith.constant 0 : i32
    return %c0_i32, %c0_i32_0 : i32, i32
  }
  func.func @transform_9(%arg0: i32) -> (i32, i32, i32) {
    %c0_i32 = arith.constant 0 : i32
    %c0_i32_0 = arith.constant 0 : i32
    %c0_i32_1 = arith.constant 0 : i32
    return %arg0, %c0_i32, %c0_i32_0 : i32, i32, i32
  }
}

</mosaic_0001>

<llo_original>
// kernel: mha_self_attention.1
$region0: #{mha_self_attention.1}
  #allocation0 [shape = 'u32[]', space=smem, size = 0x4, offset = 0x4, fixed_abs, tag = 'smem constant byte address 0x4 - core index']
  #allocation1 [shape = 'u32[144,128]{1,0:T(1,128)}', space=vmem, size = 0x12000, scoped, tag = 'internal scratch']
  %s0 = inlined_call_operand.vmem [shape: f32[2,8,128], index: 0, kind: input, shape index: {}]
  %s1 = inlined_call_operand.vmem [shape: bf16[4,32,128], index: 1, kind: input, shape index: {}]
  %s2 = inlined_call_operand.vmem [shape: f32[4,1,32], index: 2, kind: input, shape index: {}]
  %s3 = inlined_call_operand.vmem [shape: bf16[4,32,128], index: 3, kind: input, shape index: {}]
  %s4 = inlined_call_operand.vmem [shape: f32[4,1,32], index: 4, kind: input, shape index: {}]
  %s5 = inlined_call_operand.vmem [shape: bf16[4,32,128], index: 5, kind: input, shape index: {}]
  %s6 = inlined_call_operand.vmem [shape: f32[4,1,32], index: 6, kind: input, shape index: {}]
  %s7 = inlined_call_operand.vmem [shape: bf16[4,128,32], index: 7, kind: input, shape index: {}]
  %s8 = inlined_call_operand.vmem [shape: f32[1,128], index: 8, kind: input, shape index: {}]
  %s9 = inlined_call_operand.hbm [shape: f32[2,8,128], index: 9, kind: output, shape index: {}]
  %s10 = sld [smem:[#allocation0]]
  $region69: #{mha_self_attention.1} parent=0
    _
  %s12 = ssub.s32 1, %s10
  %s13 = scalar_select 0, %s12, %s10
  $region1: #{mha_self_attention.1} parent=0
    #allocation2 [shape = 'u8[8192]{0}', space=vmem, size = 0x2000, scoped, tag = 'output window, operand 0']
    #allocation3 [shape = 's32[2]{0}', space=sflag, size = 0x8, scoped, tag = 'scoped memory for mha_self_attention.1']
    %14 = vsyncpa [#allocation3], 0
    %s15 = scalar_lea.sflag [#allocation3], 1
    %16 = vsyncpa %s15, 0
    loop: start=0, step=1, limit=4
    $region2: #{mha_self_attention.1} parent=1 // loop_pre_header
      _
    $region3: #{mha_self_attention.1} parent=1 // loop_header
      %s18 = sphi 0, %s22
      %p19 = scmp.ge.s32.totalorder %s18, 4
      %s28 = sphi 0, %s30
      %s31 = sphi 0, %s28
      %s32 = sphi 0, %s31
      %s48 = sphi 0, %s32
      %s52 = sphi 0, %s52
      %s54 = sphi 0, %s52
      %s55 = sphi 0, %s54
      %s69 = sphi 0, %s55
      %s73 = sphi 0, %s73
      %s75 = sphi 0, %s73
      %s76 = sphi 0, %s75
      %s90 = sphi 0, %s76
      %s94 = sphi 0, %s94
      %s96 = sphi 0, %s94
      %s97 = sphi 0, %s96
      %s111 = sphi 0, %s97
      %s115 = sphi 0, %s115
      %s117 = sphi 0, %s115
      %s118 = sphi 0, %s117
      %s132 = sphi 0, %s118
      %s136 = sphi 0, %s136
      %s138 = sphi 0, %s136
      %s139 = sphi 0, %s138
      %s153 = sphi 0, %s139
      %s157 = sphi 0, %s157
      %s159 = sphi 0, %s157
      %s160 = sphi 0, %s159
      %s174 = sphi 0, %s160
      %s178 = sphi 0, %s178
      %s180 = sphi 0, %s178
      %s181 = sphi 0, %s180
      %s195 = sphi 0, %s181
      %s199 = sphi 0, %s199
      %s201 = sphi 0, %s199
      %s202 = sphi 0, %s201
      %s216 = sphi 0, %s202
      %s222 = sphi 0, %s224
      %s225 = sphi 0, %s222
      %s226 = sphi 0, %s225
      %s242 = sphi 0, %s226
    $region4: #{mha_self_attention.1} parent=1 // loop_header_branch
      %21 = sbr.rel (%p19) target = $region8
    $region5: #{mha_self_attention.1} parent=1 // loop_body
      %s23 = ssub.s32 %s18, 1
      %s24 = ssub.s32 %s18, 2
      %s25 = sadd.s32 %s18, 1
      %s26 = ssub.s32 %s18, %s25
      %p27 = scmp.eq.s32.totalorder %s26, 0
      %s29 = sadd.s32 %s28, 1
      %s30 = scalar_select %p27, %s28, %s29
      %p33 = pneg %p27
      %p34 = scmp.eq.s32.totalorder %s18, 1
      %p35 = por %p33, %p34
      %p36 = scmp.ne.s32.totalorder %s28, %s31
      %p37 = scmp.eq.s32.totalorder %s18, 0
      %p38 = por %p36, %p37
      %p39 = scmp.ne.s32.totalorder %s28, %s31
      %p40 = scmp.eq.s32.totalorder %s23, 1
      %p41 = por %p39, %p40
      %p42 = scmp.ne.s32.totalorder %s31, %s32
      %p43 = scmp.eq.s32.totalorder %s23, 0
      %p44 = por %p42, %p43
      %p45 = scmp.ne.s32.totalorder %s31, %s32
      %p46 = scmp.eq.s32.totalorder %s24, 1
      %p47 = por %p45, %p46
      %p49 = scmp.ne.s32.totalorder %s32, %s48
      %p50 = scmp.eq.s32.totalorder %s24, 0
      %p51 = por %p49, %p50
      %s53 = sadd.s32 %s52, 1
      %p56 = scmp.eq.s32.totalorder %s18, 1
      %p57 = scmp.ne.s32.totalorder %s52, %s54
      %p58 = scmp.eq.s32.totalorder %s18, 0
      %p59 = por %p57, %p58
      %p60 = scmp.ne.s32.totalorder %s52, %s54
      %p61 = scmp.eq.s32.totalorder %s23, 1
      %p62 = por %p60, %p61
      %p63 = scmp.ne.s32.totalorder %s54, %s55
      %p64 = scmp.eq.s32.totalorder %s23, 0
      %p65 = por %p63, %p64
      %p66 = scmp.ne.s32.totalorder %s54, %s55
      %p67 = scmp.eq.s32.totalorder %s24, 1
      %p68 = por %p66, %p67
      %p70 = scmp.ne.s32.totalorder %s55, %s69
      %p71 = scmp.eq.s32.totalorder %s24, 0
      %p72 = por %p70, %p71
      %s74 = sadd.s32 %s73, 1
      %p77 = scmp.eq.s32.totalorder %s18, 1
      %p78 = scmp.ne.s32.totalorder %s73, %s75
      %p79 = scmp.eq.s32.totalorder %s18, 0
      %p80 = por %p78, %p79
      %p81 = scmp.ne.s32.totalorder %s73, %s75
      %p82 = scmp.eq.s32.totalorder %s23, 1
      %p83 = por %p81, %p82
      %p84 = scmp.ne.s32.totalorder %s75, %s76
      %p85 = scmp.eq.s32.totalorder %s23, 0
      %p86 = por %p84, %p85
      %p87 = scmp.ne.s32.totalorder %s75, %s76
      %p88 = scmp.eq.s32.totalorder %s24, 1
      %p89 = por %p87, %p88
      %p91 = scmp.ne.s32.totalorder %s76, %s90
      %p92 = scmp.eq.s32.totalorder %s24, 0
      %p93 = por %p91, %p92
      %s95 = sadd.s32 %s94, 1
      %p98 = scmp.eq.s32.totalorder %s18, 1
      %p99 = scmp.ne.s32.totalorder %s94, %s96
      %p100 = scmp.eq.s32.totalorder %s18, 0
      %p101 = por %p99, %p100
      %p102 = scmp.ne.s32.totalorder %s94, %s96
      %p103 = scmp.eq.s32.totalorder %s23, 1
      %p104 = por %p102, %p103
      %p105 = scmp.ne.s32.totalorder %s96, %s97
      %p106 = scmp.eq.s32.totalorder %s23, 0
      %p107 = por %p105, %p106
      %p108 = scmp.ne.s32.totalorder %s96, %s97
      %p109 = scmp.eq.s32.totalorder %s24, 1
      %p110 = por %p108, %p109
      %p112 = scmp.ne.s32.totalorder %s97, %s111
      %p113 = scmp.eq.s32.totalorder %s24, 0
      %p114 = por %p112, %p113
      %s116 = sadd.s32 %s115, 1
      %p119 = scmp.eq.s32.totalorder %s18, 1
      %p120 = scmp.ne.s32.totalorder %s115, %s117
      %p121 = scmp.eq.s32.totalorder %s18, 0
      %p122 = por %p120, %p121
      %p123 = scmp.ne.s32.totalorder %s115, %s117
      %p124 = scmp.eq.s32.totalorder %s23, 1
      %p125 = por %p123, %p124
      %p126 = scmp.ne.s32.totalorder %s117, %s118
      %p127 = scmp.eq.s32.totalorder %s23, 0
      %p128 = por %p126, %p127
      %p129 = scmp.ne.s32.totalorder %s117, %s118
      %p130 = scmp.eq.s32.totalorder %s24, 1
      %p131 = por %p129, %p130
      %p133 = scmp.ne.s32.totalorder %s118, %s132
      %p134 = scmp.eq.s32.totalorder %s24, 0
      %p135 = por %p133, %p134
      %s137 = sadd.s32 %s136, 1
      %p140 = scmp.eq.s32.totalorder %s18, 1
      %p141 = scmp.ne.s32.totalorder %s136, %s138
      %p142 = scmp.eq.s32.totalorder %s18, 0
      %p143 = por %p141, %p142
      %p144 = scmp.ne.s32.totalorder %s136, %s138
      %p145 = scmp.eq.s32.totalorder %s23, 1
      %p146 = por %p144, %p145
      %p147 = scmp.ne.s32.totalorder %s138, %s139
      %p148 = scmp.eq.s32.totalorder %s23, 0
      %p149 = por %p147, %p148
      %p150 = scmp.ne.s32.totalorder %s138, %s139
      %p151 = scmp.eq.s32.totalorder %s24, 1
      %p152 = por %p150, %p151
      %p154 = scmp.ne.s32.totalorder %s139, %s153
      %p155 = scmp.eq.s32.totalorder %s24, 0
      %p156 = por %p154, %p155
      %s158 = sadd.s32 %s157, 1
      %p161 = scmp.eq.s32.totalorder %s18, 1
      %p162 = scmp.ne.s32.totalorder %s157, %s159
      %p163 = scmp.eq.s32.totalorder %s18, 0
      %p164 = por %p162, %p163
      %p165 = scmp.ne.s32.totalorder %s157, %s159
      %p166 = scmp.eq.s32.totalorder %s23, 1
      %p167 = por %p165, %p166
      %p168 = scmp.ne.s32.totalorder %s159, %s160
      %p169 = scmp.eq.s32.totalorder %s23, 0
      %p170 = por %p168, %p169
      %p171 = scmp.ne.s32.totalorder %s159, %s160
      %p172 = scmp.eq.s32.totalorder %s24, 1
      %p173 = por %p171, %p172
      %p175 = scmp.ne.s32.totalorder %s160, %s174
      %p176 = scmp.eq.s32.totalorder %s24, 0
      %p177 = por %p175, %p176
      %s179 = sadd.s32 %s178, 1
      %p182 = scmp.eq.s32.totalorder %s18, 1
      %p183 = scmp.ne.s32.totalorder %s178, %s180
      %p184 = scmp.eq.s32.totalorder %s18, 0
      %p185 = por %p183, %p184
      %p186 = scmp.ne.s32.totalorder %s178, %s180
      %p187 = scmp.eq.s32.totalorder %s23, 1
      %p188 = por %p186, %p187
      %p189 = scmp.ne.s32.totalorder %s180, %s181
      %p190 = scmp.eq.s32.totalorder %s23, 0
      %p191 = por %p189, %p190
      %p192 = scmp.ne.s32.totalorder %s180, %s181
      %p193 = scmp.eq.s32.totalorder %s24, 1
      %p194 = por %p192, %p193
      %p196 = scmp.ne.s32.totalorder %s181, %s195
      %p197 = scmp.eq.s32.totalorder %s24, 0
      %p198 = por %p196, %p197
      %s200 = sadd.s32 %s199, 1
      %p203 = scmp.eq.s32.totalorder %s18, 1
      %p204 = scmp.ne.s32.totalorder %s199, %s201
      %p205 = scmp.eq.s32.totalorder %s18, 0
      %p206 = por %p204, %p205
      %p207 = scmp.ne.s32.totalorder %s199, %s201
      %p208 = scmp.eq.s32.totalorder %s23, 1
      %p209 = por %p207, %p208
      %p210 = scmp.ne.s32.totalorder %s201, %s202
      %p211 = scmp.eq.s32.totalorder %s23, 0
      %p212 = por %p210, %p211
      %p213 = scmp.ne.s32.totalorder %s201, %s202
      %p214 = scmp.eq.s32.totalorder %s24, 1
      %p215 = por %p213, %p214
      %p217 = scmp.ne.s32.totalorder %s202, %s216
      %p218 = scmp.eq.s32.totalorder %s24, 0
      %p219 = por %p217, %p218
      %s220 = ssub.s32 %s18, %s25
      %p221 = scmp.eq.s32.totalorder %s220, 0
      %s223 = sadd.s32 %s222, 1
      %s224 = scalar_select %p221, %s222, %s223
      %p227 = pneg %p221
      %p228 = scmp.eq.s32.totalorder %s18, 1
      %p229 = por %p227, %p228
      %p230 = scmp.ne.s32.totalorder %s222, %s225
      %p231 = scmp.eq.s32.totalorder %s18, 0
      %p232 = por %p230, %p231
      %p233 = scmp.ne.s32.totalorder %s222, %s225
      %p234 = scmp.eq.s32.totalorder %s23, 1
      %p235 = por %p233, %p234
      %p236 = scmp.ne.s32.totalorder %s225, %s226
      %p237 = scmp.eq.s32.totalorder %s23, 0
      %p238 = por %p236, %p237
      %p239 = scmp.ne.s32.totalorder %s225, %s226
      %p240 = scmp.eq.s32.totalorder %s24, 1
      %p241 = por %p239, %p240
      %p243 = scmp.ne.s32.totalorder %s226, %s242
      %p244 = scmp.eq.s32.totalorder %s24, 0
      %p245 = por %p243, %p244
      %p246 = scmp.le.s32.totalorder 1, %s18
      %p247 = scmp.lt.s32.totalorder %s18, 3
      %p248 = pnand %p246, %p247
      %p249 = pneg %p248
      // Predicated region
      $region9: #{mha_self_attention.1} parent=5 // pred_check
        _
      $region10: #{mha_self_attention.1} parent=5 // pred_check_branch
        %251 = sbr.rel (%p248) target = $region12
      $region11: #{mha_self_attention.1} parent=5 // pred_region
        %s252 = ssub.s32 %s18, 1
        // Predicated region
        $region13: #{mha_self_attention.1} parent=11 // pred_check
          %p253 = pneg %p65
        $region14: #{mha_self_attention.1} parent=11 // pred_check_branch
          %255 = sbr.rel (%p253) target = $region16
        $region15: #{mha_self_attention.1} parent=11 // pred_region
          _
        $region16: #{mha_self_attention.1} parent=11 // pred_fallthru
          _
        // Predicated region
        $region17: #{mha_self_attention.1} parent=11 // pred_check
          %p256 = pneg %p86
        $region18: #{mha_self_attention.1} parent=11 // pred_check_branch
          %258 = sbr.rel (%p256) target = $region20
        $region19: #{mha_self_attention.1} parent=11 // pred_region
          _
        $region20: #{mha_self_attention.1} parent=11 // pred_fallthru
          _
        // Predicated region
        $region21: #{mha_self_attention.1} parent=11 // pred_check
          %p259 = pneg %p107
        $region22: #{mha_self_attention.1} parent=11 // pred_check_branch
          %261 = sbr.rel (%p259) target = $region24
        $region23: #{mha_self_attention.1} parent=11 // pred_region
          _
        $region24: #{mha_self_attention.1} parent=11 // pred_fallthru
          _
        // Predicated region
        $region25: #{mha_self_attention.1} parent=11 // pred_check
          %p262 = pneg %p128
        $region26: #{mha_self_attention.1} parent=11 // pred_check_branch
          %264 = sbr.rel (%p262) target = $region28
        $region27: #{mha_self_attention.1} parent=11 // pred_region
          _
        $region28: #{mha_self_attention.1} parent=11 // pred_fallthru
          _
        // Predicated region
        $region29: #{mha_self_attention.1} parent=11 // pred_check
          %p265 = pneg %p149
        $region30: #{mha_self_attention.1} parent=11 // pred_check_branch
          %267 = sbr.rel (%p265) target = $region32
        $region31: #{mha_self_attention.1} parent=11 // pred_region
          _
        $region32: #{mha_self_attention.1} parent=11 // pred_fallthru
          _
        // Predicated region
        $region33: #{mha_self_attention.1} parent=11 // pred_check
          %p268 = pneg %p170
        $region34: #{mha_self_attention.1} parent=11 // pred_check_branch
          %270 = sbr.rel (%p268) target = $region36
        $region35: #{mha_self_attention.1} parent=11 // pred_region
          _
        $region36: #{mha_self_attention.1} parent=11 // pred_fallthru
          _
        // Predicated region
        $region37: #{mha_self_attention.1} parent=11 // pred_check
          %p271 = pneg %p191
        $region38: #{mha_self_attention.1} parent=11 // pred_check_branch
          %273 = sbr.rel (%p271) target = $region40
        $region39: #{mha_self_attention.1} parent=11 // pred_region
          _
        $region40: #{mha_self_attention.1} parent=11 // pred_fallthru
          _
        // Predicated region
        $region41: #{mha_self_attention.1} parent=11 // pred_check
          %p274 = pneg %p212
        $region42: #{mha_self_attention.1} parent=11 // pred_check_branch
          %276 = sbr.rel (%p274) target = $region44
        $region43: #{mha_self_attention.1} parent=11 // pred_region
          _
        $region44: #{mha_self_attention.1} parent=11 // pred_fallthru
          _
      $region12: #{mha_self_attention.1} parent=5 // pred_fallthru
        _
      %p277 = scmp.lt.s32.totalorder %s18, 2
      // Predicated region
      $region45: #{mha_self_attention.1} parent=5 // pred_check
        %p278 = pneg %p277
      $region46: #{mha_self_attention.1} parent=5 // pred_check_branch
        %280 = sbr.rel (%p278) target = $region48
      $region47: #{mha_self_attention.1} parent=5 // pred_region
        // Predicated region
        $region49: #{mha_self_attention.1} parent=47 // pred_check
          %p281 = pneg %p38
        $region50: #{mha_self_attention.1} parent=47 // pred_check_branch
          %283 = sbr.rel (%p281) target = $region52
        $region51: #{mha_self_attention.1} parent=47 // pred_region
          %p284 = scmp.lt.s32.totalorder %s18, 1
          %s285 = scalar_select %p284, %s18, 1
          %s286 = smul.addr %s285, 8
          %s287 = scalar_lea.vmem %s0, %s286
        $region52: #{mha_self_attention.1} parent=47 // pred_fallthru
          _
      $region48: #{mha_self_attention.1} parent=5 // pred_fallthru
        _
      %p288 = scmp.le.s32.totalorder 1, %s18
      %p289 = scmp.lt.s32.totalorder %s18, 3
      %p290 = pnand %p288, %p289
      %p291 = pneg %p290
      // Predicated region
      $region53: #{mha_self_attention.1} parent=5 // pred_check
        _
      $region54: #{mha_self_attention.1} parent=5 // pred_check_branch
        %293 = sbr.rel (%p290) target = $region56
      $region55: #{mha_self_attention.1} parent=5 // pred_region
        %s294 = ssub.s32 %s18, 1
        %p295 = scmp.lt.s32.totalorder %s23, 1
        %s296 = scalar_select %p295, %s23, 1
        %s297 = smul.addr %s296, 8
        %s298 = scalar_lea.vmem %s0, %s297
        %p299 = pneg %p44
        %p300 = pneg %p41
        %p301 = pneg %p65
        %p302 = pneg %p62
        %p303 = pneg %p86
        %p304 = pneg %p83
        %p305 = pneg %p107
        %p306 = pneg %p104
        %p307 = pneg %p128
        %p308 = pneg %p125
        %p309 = pneg %p149
        %p310 = pneg %p146
        %p311 = pneg %p170
        %p312 = pneg %p167
        %p313 = pneg %p191
        %p314 = pneg %p188
        %p315 = pneg %p212
        %p316 = pneg %p209
        %p317 = pneg %p238
        %p318 = pneg %p235
        %s319 = sand.u32 %s225, 1
        %s320 = scalar_lea.sflag [#allocation3], %s319
        %s321 = sand.u32 %s225, 1
        %s322 = smul.addr %s321, 8
        %s323 = scalar_lea.vmem [#allocation2], %s322
        %p324 = scmp.lt.s32.totalorder %s23, 1
        %s325 = scalar_select %p324, %s23, 1
        %s326 = smul.addr %s325, 8
        %s327 = scalar_lea.vmem %s0, %s326
        %v329 = vld [vmem:[%s327] sm:$0xff]
        %v330 = vpack.c.bf16 %v329, %v329
        %v331 = vld [vmem:[%s1] sm:$0xf]
        %v332 = vld [vmem:[%s1 + $0x4] sm:$0xf]
        %v333 = vld [vmem:[%s1 + $0x8] sm:$0xf]
        %v334 = vld [vmem:[%s1 + $0xc] sm:$0xf]
        %v335 = vld [vmem:[%s1 + $0x10] sm:$0xf]
        %v336 = vld [vmem:[%s1 + $0x14] sm:$0xf]
        %v337 = vld [vmem:[%s1 + $0x18] sm:$0xf]
        %v338 = vld [vmem:[%s1 + $0x1c] sm:$0xf]
        %v339 = vld [vmem:[%s1 + $0x20] sm:$0xf]
        %v340 = vld [vmem:[%s1 + $0x24] sm:$0xf]
        %v341 = vld [vmem:[%s1 + $0x28] sm:$0xf]
        %v342 = vld [vmem:[%s1 + $0x2c] sm:$0xf]
        %v343 = vld [vmem:[%s1 + $0x30] sm:$0xf]
        %v344 = vld [vmem:[%s1 + $0x34] sm:$0xf]
        %v345 = vld [vmem:[%s1 + $0x38] sm:$0xf]
        %v346 = vld [vmem:[%s1 + $0x3c] sm:$0xf]
        %v347 = vld [vmem:[%s2] sm:$0x1]
        %v348 = vld [vmem:[%s2 + $0x1] sm:$0x1]
        %v349 = vld [vmem:[%s2 + $0x2] sm:$0x1]
        %v350 = vld [vmem:[%s2 + $0x3] sm:$0x1]
        %v351 = vld [vmem:[%s3] sm:$0xf]
        %v352 = vld [vmem:[%s3 + $0x4] sm:$0xf]
        %v353 = vld [vmem:[%s3 + $0x8] sm:$0xf]
        %v354 = vld [vmem:[%s3 + $0xc] sm:$0xf]
        %v355 = vld [vmem:[%s3 + $0x10] sm:$0xf]
        %v356 = vld [vmem:[%s3 + $0x14] sm:$0xf]
        %v357 = vld [vmem:[%s3 + $0x18] sm:$0xf]
        %v358 = vld [vmem:[%s3 + $0x1c] sm:$0xf]
        %v359 = vld [vmem:[%s3 + $0x20] sm:$0xf]
        %v360 = vld [vmem:[%s3 + $0x24] sm:$0xf]
        %v361 = vld [vmem:[%s3 + $0x28] sm:$0xf]
        %v362 = vld [vmem:[%s3 + $0x2c] sm:$0xf]
        %v363 = vld [vmem:[%s3 + $0x30] sm:$0xf]
        %v364 = vld [vmem:[%s3 + $0x34] sm:$0xf]
        %v365 = vld [vmem:[%s3 + $0x38] sm:$0xf]
        %v366 = vld [vmem:[%s3 + $0x3c] sm:$0xf]
        %v367 = vld [vmem:[%s4] sm:$0x1]
        %v368 = vld [vmem:[%s4 + $0x1] sm:$0x1]
        %v369 = vld [vmem:[%s4 + $0x2] sm:$0x1]
        %v370 = vld [vmem:[%s4 + $0x3] sm:$0x1]
        %v371 = vld [vmem:[%s5] sm:$0xf]
        %v372 = vld [vmem:[%s5 + $0x4] sm:$0xf]
        %v373 = vld [vmem:[%s5 + $0x8] sm:$0xf]
        %v374 = vld [vmem:[%s5 + $0xc] sm:$0xf]
        %v375 = vld [vmem:[%s5 + $0x10] sm:$0xf]
        %v376 = vld [vmem:[%s5 + $0x14] sm:$0xf]
        %v377 = vld [vmem:[%s5 + $0x18] sm:$0xf]
        %v378 = vld [vmem:[%s5 + $0x1c] sm:$0xf]
        %v379 = vld [vmem:[%s5 + $0x20] sm:$0xf]
        %v380 = vld [vmem:[%s5 + $0x24] sm:$0xf]
        %v381 = vld [vmem:[%s5 + $0x28] sm:$0xf]
        %v382 = vld [vmem:[%s5 + $0x2c] sm:$0xf]
        %v383 = vld [vmem:[%s5 + $0x30] sm:$0xf]
        %v384 = vld [vmem:[%s5 + $0x34] sm:$0xf]
        %v385 = vld [vmem:[%s5 + $0x38] sm:$0xf]
        %v386 = vld [vmem:[%s5 + $0x3c] sm:$0xf]
        %v387 = vld [vmem:[%s6] sm:$0x1]
        %v388 = vld [vmem:[%s6 + $0x1] sm:$0x1]
        %v389 = vld [vmem:[%s6 + $0x2] sm:$0x1]
        %v390 = vld [vmem:[%s6 + $0x3] sm:$0x1]
        %v391 = vld [vmem:[%s7] sm:$0xf]
        %v392 = vld [vmem:[%s7 + $0x4] sm:$0xf]
        %v393 = vld [vmem:[%s7 + $0x8] sm:$0xf]
        %v394 = vld [vmem:[%s7 + $0xc] sm:$0xf]
        %v395 = vld [vmem:[%s7 + $0x10] sm:$0xf]
        %v396 = vld [vmem:[%s7 + $0x14] sm:$0xf]
        %v397 = vld [vmem:[%s7 + $0x18] sm:$0xf]
        %v398 = vld [vmem:[%s7 + $0x1c] sm:$0xf]
        %v399 = vld [vmem:[%s7 + $0x20] sm:$0xf]
        %v400 = vld [vmem:[%s7 + $0x24] sm:$0xf]
        %v401 = vld [vmem:[%s7 + $0x28] sm:$0xf]
        %v402 = vld [vmem:[%s7 + $0x2c] sm:$0xf]
        %v403 = vld [vmem:[%s7 + $0x30] sm:$0xf]
        %v404 = vld [vmem:[%s7 + $0x34] sm:$0xf]
        %v405 = vld [vmem:[%s7 + $0x38] sm:$0xf]
        %v406 = vld [vmem:[%s7 + $0x3c] sm:$0xf]
        %v407 = vld [vmem:[%s7 + $0x40] sm:$0xf]
        %v408 = vld [vmem:[%s7 + $0x44] sm:$0xf]
        %v409 = vld [vmem:[%s7 + $0x48] sm:$0xf]
        %v410 = vld [vmem:[%s7 + $0x4c] sm:$0xf]
        %v411 = vld [vmem:[%s7 + $0x50] sm:$0xf]
        %v412 = vld [vmem:[%s7 + $0x54] sm:$0xf]
        %v413 = vld [vmem:[%s7 + $0x58] sm:$0xf]
        %v414 = vld [vmem:[%s7 + $0x5c] sm:$0xf]
        %v415 = vld [vmem:[%s7 + $0x60] sm:$0xf]
        %v416 = vld [vmem:[%s7 + $0x64] sm:$0xf]
        %v417 = vld [vmem:[%s7 + $0x68] sm:$0xf]
        %v418 = vld [vmem:[%s7 + $0x6c] sm:$0xf]
        %v419 = vld [vmem:[%s7 + $0x70] sm:$0xf]
        %v420 = vld [vmem:[%s7 + $0x74] sm:$0xf]
        %v421 = vld [vmem:[%s7 + $0x78] sm:$0xf]
        %v422 = vld [vmem:[%s7 + $0x7c] sm:$0xf]
        %v423 = vld [vmem:[%s7 + $0x80] sm:$0xf]
        %v424 = vld [vmem:[%s7 + $0x84] sm:$0xf]
        %v425 = vld [vmem:[%s7 + $0x88] sm:$0xf]
        %v426 = vld [vmem:[%s7 + $0x8c] sm:$0xf]
        %v427 = vld [vmem:[%s7 + $0x90] sm:$0xf]
        %v428 = vld [vmem:[%s7 + $0x94] sm:$0xf]
        %v429 = vld [vmem:[%s7 + $0x98] sm:$0xf]
        %v430 = vld [vmem:[%s7 + $0x9c] sm:$0xf]
        %v431 = vld [vmem:[%s7 + $0xa0] sm:$0xf]
        %v432 = vld [vmem:[%s7 + $0xa4] sm:$0xf]
        %v433 = vld [vmem:[%s7 + $0xa8] sm:$0xf]
        %v434 = vld [vmem:[%s7 + $0xac] sm:$0xf]
        %v435 = vld [vmem:[%s7 + $0xb0] sm:$0xf]
        %v436 = vld [vmem:[%s7 + $0xb4] sm:$0xf]
        %v437 = vld [vmem:[%s7 + $0xb8] sm:$0xf]
        %v438 = vld [vmem:[%s7 + $0xbc] sm:$0xf]
        %v439 = vld [vmem:[%s7 + $0xc0] sm:$0xf]
        %v440 = vld [vmem:[%s7 + $0xc4] sm:$0xf]
        %v441 = vld [vmem:[%s7 + $0xc8] sm:$0xf]
        %v442 = vld [vmem:[%s7 + $0xcc] sm:$0xf]
        %v443 = vld [vmem:[%s7 + $0xd0] sm:$0xf]
        %v444 = vld [vmem:[%s7 + $0xd4] sm:$0xf]
        %v445 = vld [vmem:[%s7 + $0xd8] sm:$0xf]
        %v446 = vld [vmem:[%s7 + $0xdc] sm:$0xf]
        %v447 = vld [vmem:[%s7 + $0xe0] sm:$0xf]
        %v448 = vld [vmem:[%s7 + $0xe4] sm:$0xf]
        %v449 = vld [vmem:[%s7 + $0xe8] sm:$0xf]
        %v450 = vld [vmem:[%s7 + $0xec] sm:$0xf]
        %v451 = vld [vmem:[%s7 + $0xf0] sm:$0xf]
        %v452 = vld [vmem:[%s7 + $0xf4] sm:$0xf]
        %v453 = vld [vmem:[%s7 + $0xf8] sm:$0xf]
        %v454 = vld [vmem:[%s7 + $0xfc] sm:$0xf]
        %v455 = vld [vmem:[%s8] sm:$0x1]
        %v460 = vlaneseq
        %v461 = vshrl.u32 %v460, 7
        %v462 = vsub.s32 0, %v461
        %v463 = vrot.slane %v347, %v462
        %v464 = vlaneseq
        %v465 = vshrl.u32 %v464, 7
        %v466 = vsub.s32 0, %v465
        %v467 = vrot.slane %v348, %v466
        %v468 = vlaneseq
        %v469 = vshrl.u32 %v468, 7
        %v470 = vsub.s32 0, %v469
        %v471 = vrot.slane %v349, %v470
        %v472 = vlaneseq
        %v473 = vshrl.u32 %v472, 7
        %v474 = vsub.s32 0, %v473
        %v475 = vrot.slane %v350, %v474
        %v484 = vunpack.c.l.b16 %v331
        %v485 = vunpack.c.l.b16 %v332
        %v486 = vunpack.c.l.b16 %v333
        %v487 = vunpack.c.l.b16 %v334
        %v488 = vpack.c.b16 %v485, %v484
        %v489 = vpack.c.b16 %v487, %v486
        %492 = vmatprep.subr.bf16.mxu0 0
        %493 = vmatpush1.bf16.xpose.msra.mxu0 %v488
        %494 = vmatprep.subr.bf16.mxu0 0
        %495 = vmatpush1.bf16.xpose.msra.mxu0 %v489
        %496 = vmatprep.subr.bf16.mxu0 0
        %497 = vmatpush1.bf16.xpose.msra.mxu0 0
        %498 = vmatprep.subr.bf16.mxu0 0
        %499 = vmatpush1.bf16.xpose.msra.mxu0 0
        %500 = vmatprep.subr.bf16.mxu0 0
        %501 = vmatpush1.bf16.xpose.msra.mxu0 0
        %502 = vmatprep.subr.bf16.mxu0 0
        %503 = vmatpush1.bf16.xpose.msra.mxu0 0
        %504 = vmatprep.subr.bf16.mxu0 0
        %505 = vmatpush1.bf16.xpose.msra.mxu0 0
        %506 = vmatprep.subr.bf16.mxu0 0
        %507 = vmatpush1.bf16.xpose.msra.mxu0 0
        %508 = vmatprep.subr.bf16.mxu0 0
        %509 = vmatpush1.bf16.xpose.msra.mxu0 0
        %510 = vmatprep.subr.bf16.mxu0 0
        %511 = vmatpush1.bf16.xpose.msra.mxu0 0
        %512 = vmatprep.subr.bf16.mxu0 0
        %513 = vmatpush1.bf16.xpose.msra.mxu0 0
        %514 = vmatprep.subr.bf16.mxu0 0
        %515 = vmatpush1.bf16.xpose.msra.mxu0 0
        %516 = vmatprep.subr.bf16.mxu0 0
        %517 = vmatpush1.bf16.xpose.msra.mxu0 0
        %518 = vmatprep.subr.bf16.mxu0 0
        %519 = vmatpush1.bf16.xpose.msra.mxu0 0
        %520 = vmatprep.subr.bf16.mxu0 0
        %521 = vmatpush1.bf16.xpose.msra.mxu0 0
        %522 = vmatprep.subr.bf16.mxu0 0
        %523 = vmatpush1.bf16.xpose.msra.mxu0 0
        %524 = vmatprep.mubr.bf16.mxu0 0
        %525 = vmatmul.mubr.bf16.gmra.mrb[0].mxu0 %v330
        %v526 = vpop.f32.mrb[0].mxu0
        %v527 = vadd.f32 %v463, %v526
        %v528 = vpop.f32.mrb[0].mxu0
        %v529 = vpop.f32.mrb[0].mxu0
        %v530 = vpop.f32.mrb[0].mxu0
        %531 = vdwg.mxu0
        %v536 = vunpack.c.l.b16 %v335
        %v537 = vunpack.c.l.b16 %v336
        %v538 = vunpack.c.l.b16 %v337
        %v539 = vunpack.c.l.b16 %v338
        %v540 = vpack.c.b16 %v537, %v536
        %v541 = vpack.c.b16 %v539, %v538
        %544 = vmatprep.subr.bf16.mxu0 0
        %545 = vmatpush1.bf16.xpose.msra.mxu0 %v540
        %546 = vmatprep.subr.bf16.mxu0 0
        %547 = vmatpush1.bf16.xpose.msra.mxu0 %v541
        %548 = vmatprep.subr.bf16.mxu0 0
        %549 = vmatpush1.bf16.xpose.msra.mxu0 0
        %550 = vmatprep.subr.bf16.mxu0 0
        %551 = vmatpush1.bf16.xpose.msra.mxu0 0
        %552 = vmatprep.subr.bf16.mxu0 0
        %553 = vmatpush1.bf16.xpose.msra.mxu0 0
        %554 = vmatprep.subr.bf16.mxu0 0
        %555 = vmatpush1.bf16.xpose.msra.mxu0 0
        %556 = vmatprep.subr.bf16.mxu0 0
        %557 = vmatpush1.bf16.xpose.msra.mxu0 0
        %558 = vmatprep.subr.bf16.mxu0 0
        %559 = vmatpush1.bf16.xpose.msra.mxu0 0
        %560 = vmatprep.subr.bf16.mxu0 0
        %561 = vmatpush1.bf16.xpose.msra.mxu0 0
        %562 = vmatprep.subr.bf16.mxu0 0
        %563 = vmatpush1.bf16.xpose.msra.mxu0 0
        %564 = vmatprep.subr.bf16.mxu0 0
        %565 = vmatpush1.bf16.xpose.msra.mxu0 0
        %566 = vmatprep.subr.bf16.mxu0 0
        %567 = vmatpush1.bf16.xpose.msra.mxu0 0
        %568 = vmatprep.subr.bf16.mxu0 0
        %569 = vmatpush1.bf16.xpose.msra.mxu0 0
        %570 = vmatprep.subr.bf16.mxu0 0
        %571 = vmatpush1.bf16.xpose.msra.mxu0 0
        %572 = vmatprep.subr.bf16.mxu0 0
        %573 = vmatpush1.bf16.xpose.msra.mxu0 0
        %574 = vmatprep.subr.bf16.mxu0 0
        %575 = vmatpush1.bf16.xpose.msra.mxu0 0
        %576 = vmatprep.mubr.bf16.mxu0 0
        %577 = vmatmul.mubr.bf16.gmra.mrb[0].mxu0 %v330
        %v578 = vpop.f32.mrb[0].mxu0
        %v579 = vadd.f32 %v467, %v578
        %v580 = vpop.f32.mrb[0].mxu0
        %v581 = vpop.f32.mrb[0].mxu0
        %v582 = vpop.f32.mrb[0].mxu0
        %583 = vdwg.mxu0
        %v588 = vunpack.c.l.b16 %v339
        %v589 = vunpack.c.l.b16 %v340
        %v590 = vunpack.c.l.b16 %v341
        %v591 = vunpack.c.l.b16 %v342
        %v592 = vpack.c.b16 %v589, %v588
        %v593 = vpack.c.b16 %v591, %v590
        %596 = vmatprep.subr.bf16.mxu0 0
        %597 = vmatpush1.bf16.xpose.msra.mxu0 %v592
        %598 = vmatprep.subr.bf16.mxu0 0
        %599 = vmatpush1.bf16.xpose.msra.mxu0 %v593
        %600 = vmatprep.subr.bf16.mxu0 0
        %601 = vmatpush1.bf16.xpose.msra.mxu0 0
        %602 = vmatprep.subr.bf16.mxu0 0
        %603 = vmatpush1.bf16.xpose.msra.mxu0 0
        %604 = vmatprep.subr.bf16.mxu0 0
        %605 = vmatpush1.bf16.xpose.msra.mxu0 0
        %606 = vmatprep.subr.bf16.mxu0 0
        %607 = vmatpush1.bf16.xpose.msra.mxu0 0
        %608 = vmatprep.subr.bf16.mxu0 0
        %609 = vmatpush1.bf16.xpose.msra.mxu0 0
        %610 = vmatprep.subr.bf16.mxu0 0
        %611 = vmatpush1.bf16.xpose.msra.mxu0 0
        %612 = vmatprep.subr.bf16.mxu0 0
        %613 = vmatpush1.bf16.xpose.msra.mxu0 0
        %614 = vmatprep.subr.bf16.mxu0 0
        %615 = vmatpush1.bf16.xpose.msra.mxu0 0
        %616 = vmatprep.subr.bf16.mxu0 0
        %617 = vmatpush1.bf16.xpose.msra.mxu0 0
        %618 = vmatprep.subr.bf16.mxu0 0
        %619 = vmatpush1.bf16.xpose.msra.mxu0 0
        %620 = vmatprep.subr.bf16.mxu0 0
        %621 = vmatpush1.bf16.xpose.msra.mxu0 0
        %622 = vmatprep.subr.bf16.mxu0 0
        %623 = vmatpush1.bf16.xpose.msra.mxu0 0
        %624 = vmatprep.subr.bf16.mxu0 0
        %625 = vmatpush1.bf16.xpose.msra.mxu0 0
        %626 = vmatprep.subr.bf16.mxu0 0
        %627 = vmatpush1.bf16.xpose.msra.mxu0 0
        %628 = vmatprep.mubr.bf16.mxu0 0
        %629 = vmatmul.mubr.bf16.gmra.mrb[0].mxu0 %v330
        %v630 = vpop.f32.mrb[0].mxu0
        %v631 = vadd.f32 %v471, %v630
        %v632 = vpop.f32.mrb[0].mxu0
        %v633 = vpop.f32.mrb[0].mxu0
        %v634 = vpop.f32.mrb[0].mxu0
        %635 = vdwg.mxu0
        %v640 = vunpack.c.l.b16 %v343
        %v641 = vunpack.c.l.b16 %v344
        %v642 = vunpack.c.l.b16 %v345
        %v643 = vunpack.c.l.b16 %v346
        %v644 = vpack.c.b16 %v641, %v640
        %v645 = vpack.c.b16 %v643, %v642
        %648 = vmatprep.subr.bf16.mxu0 0
        %649 = vmatpush1.bf16.xpose.msra.mxu0 %v644
        %650 = vmatprep.subr.bf16.mxu0 0
        %651 = vmatpush1.bf16.xpose.msra.mxu0 %v645
        %652 = vmatprep.subr.bf16.mxu0 0
        %653 = vmatpush1.bf16.xpose.msra.mxu0 0
        %654 = vmatprep.subr.bf16.mxu0 0
        %655 = vmatpush1.bf16.xpose.msra.mxu0 0
        %656 = vmatprep.subr.bf16.mxu0 0
        %657 = vmatpush1.bf16.xpose.msra.mxu0 0
        %658 = vmatprep.subr.bf16.mxu0 0
        %659 = vmatpush1.bf16.xpose.msra.mxu0 0
        %660 = vmatprep.subr.bf16.mxu0 0
        %661 = vmatpush1.bf16.xpose.msra.mxu0 0
        %662 = vmatprep.subr.bf16.mxu0 0
        %663 = vmatpush1.bf16.xpose.msra.mxu0 0
        %664 = vmatprep.subr.bf16.mxu0 0
        %665 = vmatpush1.bf16.xpose.msra.mxu0 0
        %666 = vmatprep.subr.bf16.mxu0 0
        %667 = vmatpush1.bf16.xpose.msra.mxu0 0
        %668 = vmatprep.subr.bf16.mxu0 0
        %669 = vmatpush1.bf16.xpose.msra.mxu0 0
        %670 = vmatprep.subr.bf16.mxu0 0
        %671 = vmatpush1.bf16.xpose.msra.mxu0 0
        %672 = vmatprep.subr.bf16.mxu0 0
        %673 = vmatpush1.bf16.xpose.msra.mxu0 0
        %674 = vmatprep.subr.bf16.mxu0 0
        %675 = vmatpush1.bf16.xpose.msra.mxu0 0
        %676 = vmatprep.subr.bf16.mxu0 0
        %677 = vmatpush1.bf16.xpose.msra.mxu0 0
        %678 = vmatprep.subr.bf16.mxu0 0
        %679 = vmatpush1.bf16.xpose.msra.mxu0 0
        %680 = vmatprep.mubr.bf16.mxu0 0
        %681 = vmatmul.mubr.bf16.gmra.mrb[0].mxu0 %v330
        %v682 = vpop.f32.mrb[0].mxu0
        %v683 = vadd.f32 %v475, %v682
        %v684 = vpop.f32.mrb[0].mxu0
        %v685 = vpop.f32.mrb[0].mxu0
        %v686 = vpop.f32.mrb[0].mxu0
        %687 = vdwg.mxu0
        %v692 = vlaneseq
        %v693 = vshrl.u32 %v692, 7
        %v694 = vsub.s32 0, %v693
        %v695 = vrot.slane %v367, %v694
        %v696 = vlaneseq
        %v697 = vshrl.u32 %v696, 7
        %v698 = vsub.s32 0, %v697
        %v699 = vrot.slane %v368, %v698
        %v700 = vlaneseq
        %v701 = vshrl.u32 %v700, 7
        %v702 = vsub.s32 0, %v701
        %v703 = vrot.slane %v369, %v702
        %v704 = vlaneseq
        %v705 = vshrl.u32 %v704, 7
        %v706 = vsub.s32 0, %v705
        %v707 = vrot.slane %v370, %v706
        %v716 = vunpack.c.l.b16 %v351
        %v717 = vunpack.c.l.b16 %v352
        %v718 = vunpack.c.l.b16 %v353
        %v719 = vunpack.c.l.b16 %v354
        %v720 = vpack.c.b16 %v717, %v716
        %v721 = vpack.c.b16 %v719, %v718
        %724 = vmatprep.subr.bf16.mxu0 0
        %725 = vmatpush1.bf16.xpose.msra.mxu0 %v720
        %726 = vmatprep.subr.bf16.mxu0 0
        %727 = vmatpush1.bf16.xpose.msra.mxu0 %v721
        %728 = vmatprep.subr.bf16.mxu0 0
        %729 = vmatpush1.bf16.xpose.msra.mxu0 0
        %730 = vmatprep.subr.bf16.mxu0 0
        %731 = vmatpush1.bf16.xpose.msra.mxu0 0
        %732 = vmatprep.subr.bf16.mxu0 0
        %733 = vmatpush1.bf16.xpose.msra.mxu0 0
        %734 = vmatprep.subr.bf16.mxu0 0
        %735 = vmatpush1.bf16.xpose.msra.mxu0 0
        %736 = vmatprep.subr.bf16.mxu0 0
        %737 = vmatpush1.bf16.xpose.msra.mxu0 0
        %738 = vmatprep.subr.bf16.mxu0 0
        %739 = vmatpush1.bf16.xpose.msra.mxu0 0
        %740 = vmatprep.subr.bf16.mxu0 0
        %741 = vmatpush1.bf16.xpose.msra.mxu0 0
        %742 = vmatprep.subr.bf16.mxu0 0
        %743 = vmatpush1.bf16.xpose.msra.mxu0 0
        %744 = vmatprep.subr.bf16.mxu0 0
        %745 = vmatpush1.bf16.xpose.msra.mxu0 0
        %746 = vmatprep.subr.bf16.mxu0 0
        %747 = vmatpush1.bf16.xpose.msra.mxu0 0
        %748 = vmatprep.subr.bf16.mxu0 0
        %749 = vmatpush1.bf16.xpose.msra.mxu0 0
        %750 = vmatprep.subr.bf16.mxu0 0
        %751 = vmatpush1.bf16.xpose.msra.mxu0 0
        %752 = vmatprep.subr.bf16.mxu0 0
        %753 = vmatpush1.bf16.xpose.msra.mxu0 0
        %754 = vmatprep.subr.bf16.mxu0 0
        %755 = vmatpush1.bf16.xpose.msra.mxu0 0
        %756 = vmatprep.mubr.bf16.mxu0 0
        %757 = vmatmul.mubr.bf16.gmra.mrb[0].mxu0 %v330
        %v758 = vpop.f32.mrb[0].mxu0
        %v759 = vadd.f32 %v695, %v758
        %v760 = vpop.f32.mrb[0].mxu0
        %v761 = vpop.f32.mrb[0].mxu0
        %v762 = vpop.f32.mrb[0].mxu0
        %763 = vdwg.mxu0
        %v768 = vunpack.c.l.b16 %v355
        %v769 = vunpack.c.l.b16 %v356
        %v770 = vunpack.c.l.b16 %v357
        %v771 = vunpack.c.l.b16 %v358
        %v772 = vpack.c.b16 %v769, %v768
        %v773 = vpack.c.b16 %v771, %v770
        %776 = vmatprep.subr.bf16.mxu0 0
        %777 = vmatpush1.bf16.xpose.msra.mxu0 %v772
        %778 = vmatprep.subr.bf16.mxu0 0
        %779 = vmatpush1.bf16.xpose.msra.mxu0 %v773
        %780 = vmatprep.subr.bf16.mxu0 0
        %781 = vmatpush1.bf16.xpose.msra.mxu0 0
        %782 = vmatprep.subr.bf16.mxu0 0
        %783 = vmatpush1.bf16.xpose.msra.mxu0 0
        %784 = vmatprep.subr.bf16.mxu0 0
        %785 = vmatpush1.bf16.xpose.msra.mxu0 0
        %786 = vmatprep.subr.bf16.mxu0 0
        %787 = vmatpush1.bf16.xpose.msra.mxu0 0
        %788 = vmatprep.subr.bf16.mxu0 0
        %789 = vmatpush1.bf16.xpose.msra.mxu0 0
        %790 = vmatprep.subr.bf16.mxu0 0
        %791 = vmatpush1.bf16.xpose.msra.mxu0 0
        %792 = vmatprep.subr.bf16.mxu0 0
        %793 = vmatpush1.bf16.xpose.msra.mxu0 0
        %794 = vmatprep.subr.bf16.mxu0 0
        %795 = vmatpush1.bf16.xpose.msra.mxu0 0
        %796 = vmatprep.subr.bf16.mxu0 0
        %797 = vmatpush1.bf16.xpose.msra.mxu0 0
        %798 = vmatprep.subr.bf16.mxu0 0
        %799 = vmatpush1.bf16.xpose.msra.mxu0 0
        %800 = vmatprep.subr.bf16.mxu0 0
        %801 = vmatpush1.bf16.xpose.msra.mxu0 0
        %802 = vmatprep.subr.bf16.mxu0 0
        %803 = vmatpush1.bf16.xpose.msra.mxu0 0
        %804 = vmatprep.subr.bf16.mxu0 0
        %805 = vmatpush1.bf16.xpose.msra.mxu0 0
        %806 = vmatprep.subr.bf16.mxu0 0
        %807 = vmatpush1.bf16.xpose.msra.mxu0 0
        %808 = vmatprep.mubr.bf16.mxu0 0
        %809 = vmatmul.mubr.bf16.gmra.mrb[0].mxu0 %v330
        %v810 = vpop.f32.mrb[0].mxu0
        %v811 = vadd.f32 %v699, %v810
        %v812 = vpop.f32.mrb[0].mxu0
        %v813 = vpop.f32.mrb[0].mxu0
        %v814 = vpop.f32.mrb[0].mxu0
        %815 = vdwg.mxu0
        %v820 = vunpack.c.l.b16 %v359
        %v821 = vunpack.c.l.b16 %v360
        %v822 = vunpack.c.l.b16 %v361
        %v823 = vunpack.c.l.b16 %v362
        %v824 = vpack.c.b16 %v821, %v820
        %v825 = vpack.c.b16 %v823, %v822
        %828 = vmatprep.subr.bf16.mxu0 0
        %829 = vmatpush1.bf16.xpose.msra.mxu0 %v824
        %830 = vmatprep.subr.bf16.mxu0 0
        %831 = vmatpush1.bf16.xpose.msra.mxu0 %v825
        %832 = vmatprep.subr.bf16.mxu0 0
        %833 = vmatpush1.bf16.xpose.msra.mxu0 0
        %834 = vmatprep.subr.bf16.mxu0 0
        %835 = vmatpush1.bf16.xpose.msra.mxu0 0
        %836 = vmatprep.subr.bf16.mxu0 0
        %837 = vmatpush1.bf16.xpose.msra.mxu0 0
        %838 = vmatprep.subr.bf16.mxu0 0
        %839 = vmatpush1.bf16.xpose.msra.mxu0 0
        %840 = vmatprep.subr.bf16.mxu0 0
        %841 = vmatpush1.bf16.xpose.msra.mxu0 0
        %842 = vmatprep.subr.bf16.mxu0 0
        %843 = vmatpush1.bf16.xpose.msra.mxu0 0
        %844 = vmatprep.subr.bf16.mxu0 0
        %845 = vmatpush1.bf16.xpose.msra.mxu0 0
        %846 = vmatprep.subr.bf16.mxu0 0
        %847 = vmatpush1.bf16.xpose.msra.mxu0 0
        %848 = vmatprep.subr.bf16.mxu0 0
        %849 = vmatpush1.bf16.xpose.msra.mxu0 0
        %850 = vmatprep.subr.bf16.mxu0 0
        %851 = vmatpush1.bf16.xpose.msra.mxu0 0
        %852 = vmatprep.subr.bf16.mxu0 0
        %853 = vmatpush1.bf16.xpose.msra.mxu0 0
        %854 = vmatprep.subr.bf16.mxu0 0
        %855 = vmatpush1.bf16.xpose.msra.mxu0 0
        %856 = vmatprep.subr.bf16.mxu0 0
        %857 = vmatpush1.bf16.xpose.msra.mxu0 0
        %858 = vmatprep.subr.bf16.mxu0 0
        %859 = vmatpush1.bf16.xpose.msra.mxu0 0
        %860 = vmatprep.mubr.bf16.mxu0 0
        %861 = vmatmul.mubr.bf16.gmra.mrb[0].mxu0 %v330
        %v862 = vpop.f32.mrb[0].mxu0
        %v863 = vadd.f32 %v703, %v862
        %v864 = vpop.f32.mrb[0].mxu0
        %v865 = vpop.f32.mrb[0].mxu0
        %v866 = vpop.f32.mrb[0].mxu0
        %867 = vdwg.mxu0
        %v872 = vunpack.c.l.b16 %v363
        %v873 = vunpack.c.l.b16 %v364
        %v874 = vunpack.c.l.b16 %v365
        %v875 = vunpack.c.l.b16 %v366
        %v876 = vpack.c.b16 %v873, %v872
        %v877 = vpack.c.b16 %v875, %v874
        %880 = vmatprep.subr.bf16.mxu0 0
        %881 = vmatpush1.bf16.xpose.msra.mxu0 %v876
        %882 = vmatprep.subr.bf16.mxu0 0
        %883 = vmatpush1.bf16.xpose.msra.mxu0 %v877
        %884 = vmatprep.subr.bf16.mxu0 0
        %885 = vmatpush1.bf16.xpose.msra.mxu0 0
        %886 = vmatprep.subr.bf16.mxu0 0
        %887 = vmatpush1.bf16.xpose.msra.mxu0 0
        %888 = vmatprep.subr.bf16.mxu0 0
        %889 = vmatpush1.bf16.xpose.msra.mxu0 0
        %890 = vmatprep.subr.bf16.mxu0 0
        %891 = vmatpush1.bf16.xpose.msra.mxu0 0
        %892 = vmatprep.subr.bf16.mxu0 0
        %893 = vmatpush1.bf16.xpose.msra.mxu0 0
        %894 = vmatprep.subr.bf16.mxu0 0
        %895 = vmatpush1.bf16.xpose.msra.mxu0 0
        %896 = vmatprep.subr.bf16.mxu0 0
        %897 = vmatpush1.bf16.xpose.msra.mxu0 0
        %898 = vmatprep.subr.bf16.mxu0 0
        %899 = vmatpush1.bf16.xpose.msra.mxu0 0
        %900 = vmatprep.subr.bf16.mxu0 0
        %901 = vmatpush1.bf16.xpose.msra.mxu0 0
        %902 = vmatprep.subr.bf16.mxu0 0
        %903 = vmatpush1.bf16.xpose.msra.mxu0 0
        %904 = vmatprep.subr.bf16.mxu0 0
        %905 = vmatpush1.bf16.xpose.msra.mxu0 0
        %906 = vmatprep.subr.bf16.mxu0 0
        %907 = vmatpush1.bf16.xpose.msra.mxu0 0
        %908 = vmatprep.subr.bf16.mxu0 0
        %909 = vmatpush1.bf16.xpose.msra.mxu0 0
        %910 = vmatprep.subr.bf16.mxu0 0
        %911 = vmatpush1.bf16.xpose.msra.mxu0 0
        %912 = vmatprep.mubr.bf16.mxu0 0
        %913 = vmatmul.mubr.bf16.gmra.mrb[0].mxu0 %v330
        %v914 = vpop.f32.mrb[0].mxu0
        %v915 = vadd.f32 %v707, %v914
        %v916 = vpop.f32.mrb[0].mxu0
        %v917 = vpop.f32.mrb[0].mxu0
        %v918 = vpop.f32.mrb[0].mxu0
        %919 = vdwg.mxu0
        %v924 = vlaneseq
        %v925 = vshrl.u32 %v924, 7
        %v926 = vsub.s32 0, %v925
        %v927 = vrot.slane %v387, %v926
        %v928 = vlaneseq
        %v929 = vshrl.u32 %v928, 7
        %v930 = vsub.s32 0, %v929
        %v931 = vrot.slane %v388, %v930
        %v932 = vlaneseq
        %v933 = vshrl.u32 %v932, 7
        %v934 = vsub.s32 0, %v933
        %v935 = vrot.slane %v389, %v934
        %v936 = vlaneseq
        %v937 = vshrl.u32 %v936, 7
        %v938 = vsub.s32 0, %v937
        %v939 = vrot.slane %v390, %v938
        %v948 = vunpack.c.l.b16 %v371
        %v949 = vunpack.c.l.b16 %v372
        %v950 = vunpack.c.l.b16 %v373
        %v951 = vunpack.c.l.b16 %v374
        %v952 = vpack.c.b16 %v949, %v948
        %v953 = vpack.c.b16 %v951, %v950
        %956 = vmatprep.subr.bf16.mxu0 0
        %957 = vmatpush1.bf16.xpose.msra.mxu0 %v952
        %958 = vmatprep.subr.bf16.mxu0 0
        %959 = vmatpush1.bf16.xpose.msra.mxu0 %v953
        %960 = vmatprep.subr.bf16.mxu0 0
        %961 = vmatpush1.bf16.xpose.msra.mxu0 0
        %962 = vmatprep.subr.bf16.mxu0 0
        %963 = vmatpush1.bf16.xpose.msra.mxu0 0
        %964 = vmatprep.subr.bf16.mxu0 0
        %965 = vmatpush1.bf16.xpose.msra.mxu0 0
        %966 = vmatprep.subr.bf16.mxu0 0
        %967 = vmatpush1.bf16.xpose.msra.mxu0 0
        %968 = vmatprep.subr.bf16.mxu0 0
        %969 = vmatpush1.bf16.xpose.msra.mxu0 0
        %970 = vmatprep.subr.bf16.mxu0 0
        %971 = vmatpush1.bf16.xpose.msra.mxu0 0
        %972 = vmatprep.subr.bf16.mxu0 0
        %973 = vmatpush1.bf16.xpose.msra.mxu0 0
        %974 = vmatprep.subr.bf16.mxu0 0
        %975 = vmatpush1.bf16.xpose.msra.mxu0 0
        %976 = vmatprep.subr.bf16.mxu0 0
        %977 = vmatpush1.bf16.xpose.msra.mxu0 0
        %978 = vmatprep.subr.bf16.mxu0 0
        %979 = vmatpush1.bf16.xpose.msra.mxu0 0
        %980 = vmatprep.subr.bf16.mxu0 0
        %981 = vmatpush1.bf16.xpose.msra.mxu0 0
        %982 = vmatprep.subr.bf16.mxu0 0
        %983 = vmatpush1.bf16.xpose.msra.mxu0 0
        %984 = vmatprep.subr.bf16.mxu0 0
        %985 = vmatpush1.bf16.xpose.msra.mxu0 0
        %986 = vmatprep.subr.bf16.mxu0 0
        %987 = vmatpush1.bf16.xpose.msra.mxu0 0
        %988 = vmatprep.mubr.bf16.mxu0 0
        %989 = vmatmul.mubr.bf16.gmra.mrb[0].mxu0 %v330
        %v990 = vpop.f32.mrb[0].mxu0
        %v991 = vadd.f32 %v927, %v990
        %v992 = vpop.f32.mrb[0].mxu0
        %v993 = vpop.f32.mrb[0].mxu0
        %v994 = vpop.f32.mrb[0].mxu0
        %995 = vdwg.mxu0
        %v1000 = vunpack.c.l.b16 %v375
        %v1001 = vunpack.c.l.b16 %v376
        %v1002 = vunpack.c.l.b16 %v377
        %v1003 = vunpack.c.l.b16 %v378
        %v1004 = vpack.c.b16 %v1001, %v1000
        %v1005 = vpack.c.b16 %v1003, %v1002
        %1008 = vmatprep.subr.bf16.mxu0 0
        %1009 = vmatpush1.bf16.xpose.msra.mxu0 %v1004
        %1010 = vmatprep.subr.bf16.mxu0 0
        %1011 = vmatpush1.bf16.xpose.msra.mxu0 %v1005
        %1012 = vmatprep.subr.bf16.mxu0 0
        %1013 = vmatpush1.bf16.xpose.msra.mxu0 0
        %1014 = vmatprep.subr.bf16.mxu0 0
        %1015 = vmatpush1.bf16.xpose.msra.mxu0 0
        %1016 = vmatprep.subr.bf16.mxu0 0
        %1017 = vmatpush1.bf16.xpose.msra.mxu0 0
        %1018 = vmatprep.subr.bf16.mxu0 0
        %1019 = vmatpush1.bf16.xpose.msra.mxu0 0
        %1020 = vmatprep.subr.bf16.mxu0 0
        %1021 = vmatpush1.bf16.xpose.msra.mxu0 0
        %1022 = vmatprep.subr.bf16.mxu0 0
        %1023 = vmatpush1.bf16.xpose.msra.mxu0 0
        %1024 = vmatprep.subr.bf16.mxu0 0
        %1025 = vmatpush1.bf16.xpose.msra.mxu0 0
        %1026 = vmatprep.subr.bf16.mxu0 0
        %1027 = vmatpush1.bf16.xpose.msra.mxu0 0
        %1028 = vmatprep.subr.bf16.mxu0 0
        %1029 = vmatpush1.bf16.xpose.msra.mxu0 0
        %1030 = vmatprep.subr.bf16.mxu0 0
        %1031 = vmatpush1.bf16.xpose.msra.mxu0 0
        %1032 = vmatprep.subr.bf16.mxu0 0
        %1033 = vmatpush1.bf16.xpose.msra.mxu0 0
        %1034 = vmatprep.subr.bf16.mxu0 0
        %1035 = vmatpush1.bf16.xpose.msra.mxu0 0
        %1036 = vmatprep.subr.bf16.mxu0 0
        %1037 = vmatpush1.bf16.xpose.msra.mxu0 0
        %1038 = vmatprep.subr.bf16.mxu0 0
        %1039 = vmatpush1.bf16.xpose.msra.mxu0 0
        %1040 = vmatprep.mubr.bf16.mxu0 0
        %1041 = vmatmul.mubr.bf16.gmra.mrb[0].mxu0 %v330
        %v1042 = vpop.f32.mrb[0].mxu0
        %v1043 = vadd.f32 %v931, %v1042
        %v1044 = vpop.f32.mrb[0].mxu0
        %v1045 = vpop.f32.mrb[0].mxu0
        %v1046 = vpop.f32.mrb[0].mxu0
        %1047 = vdwg.mxu0
        %v1052 = vunpack.c.l.b16 %v379
        %v1053 = vunpack.c.l.b16 %v380
        %v1054 = vunpack.c.l.b16 %v381
        %v1055 = vunpack.c.l.b16 %v382
        %v1056 = vpack.c.b16 %v1053, %v1052
        %v1057 = vpack.c.b16 %v1055, %v1054
        %1060 = vmatprep.subr.bf16.mxu0 0
        %1061 = vmatpush1.bf16.xpose.msra.mxu0 %v1056
        %1062 = vmatprep.subr.bf16.mxu0 0
        %1063 = vmatpush1.bf16.xpose.msra.mxu0 %v1057
        %1064 = vmatprep.subr.bf16.mxu0 0
        %1065 = vmatpush1.bf16.xpose.msra.mxu0 0
        %1066 = vmatprep.subr.bf16.mxu0 0
        %1067 = vmatpush1.bf16.xpose.msra.mxu0 0
        %1068 = vmatprep.subr.bf16.mxu0 0
        %1069 = vmatpush1.bf16.xpose.msra.mxu0 0
        %1070 = vmatprep.subr.bf16.mxu0 0
        %1071 = vmatpush1.bf16.xpose.msra.mxu0 0
        %1072 = vmatprep.subr.bf16.mxu0 0
        %1073 = vmatpush1.bf16.xpose.msra.mxu0 0
        %1074 = vmatprep.subr.bf16.mxu0 0
        %1075 = vmatpush1.bf16.xpose.msra.mxu0 0
        %1076 = vmatprep.subr.bf16.mxu0 0
        %1077 = vmatpush1.bf16.xpose.msra.mxu0 0
        %1078 = vmatprep.subr.bf16.mxu0 0
        %1079 = vmatpush1.bf16.xpose.msra.mxu0 0
        %1080 = vmatprep.subr.bf16.mxu0 0
        %1081 = vmatpush1.bf16.xpose.msra.mxu0 0
        %1082 = vmatprep.subr.bf16.mxu0 0
        %1083 = vmatpush1.bf16.xpose.msra.mxu0 0
        %1084 = vmatprep.subr.bf16.mxu0 0
        %1085 = vmatpush1.bf16.xpose.msra.mxu0 0
        %1086 = vmatprep.subr.bf16.mxu0 0
        %1087 = vmatpush1.bf16.xpose.msra.mxu0 0
        %1088 = vmatprep.subr.bf16.mxu0 0
        %1089 = vmatpush1.bf16.xpose.msra.mxu0 0
        %1090 = vmatprep.subr.bf16.mxu0 0
        %1091 = vmatpush1.bf16.xpose.msra.mxu0 0
        %1092 = vmatprep.mubr.bf16.mxu0 0
        %1093 = vmatmul.mubr.bf16.gmra.mrb[0].mxu0 %v330
        %v1094 = vpop.f32.mrb[0].mxu0
        %v1095 = vadd.f32 %v935, %v1094
        %v1096 = vpop.f32.mrb[0].mxu0
        %v1097 = vpop.f32.mrb[0].mxu0
        %v1098 = vpop.f32.mrb[0].mxu0
        %1099 = vdwg.mxu0
        %v1104 = vunpack.c.l.b16 %v383
        %v1105 = vunpack.c.l.b16 %v384
        %v1106 = vunpack.c.l.b16 %v385
        %v1107 = vunpack.c.l.b16 %v386
        %v1108 = vpack.c.b16 %v1105, %v1104
        %v1109 = vpack.c.b16 %v1107, %v1106
        %1112 = vmatprep.subr.bf16.mxu0 0
        %1113 = vmatpush1.bf16.xpose.msra.mxu0 %v1108
        %1114 = vmatprep.subr.bf16.mxu0 0
        %1115 = vmatpush1.bf16.xpose.msra.mxu0 %v1109
        %1116 = vmatprep.subr.bf16.mxu0 0
        %1117 = vmatpush1.bf16.xpose.msra.mxu0 0
        %1118 = vmatprep.subr.bf16.mxu0 0
        %1119 = vmatpush1.bf16.xpose.msra.mxu0 0
        %1120 = vmatprep.subr.bf16.mxu0 0
        %1121 = vmatpush1.bf16.xpose.msra.mxu0 0
        %1122 = vmatprep.subr.bf16.mxu0 0
        %1123 = vmatpush1.bf16.xpose.msra.mxu0 0
        %1124 = vmatprep.subr.bf16.mxu0 0
        %1125 = vmatpush1.bf16.xpose.msra.mxu0 0
        %1126 = vmatprep.subr.bf16.mxu0 0
        %1127 = vmatpush1.bf16.xpose.msra.mxu0 0
        %1128 = vmatprep.subr.bf16.mxu0 0
        %1129 = vmatpush1.bf16.xpose.msra.mxu0 0
        %1130 = vmatprep.subr.bf16.mxu0 0
        %1131 = vmatpush1.bf16.xpose.msra.mxu0 0
        %1132 = vmatprep.subr.bf16.mxu0 0
        %1133 = vmatpush1.bf16.xpose.msra.mxu0 0
        %1134 = vmatprep.subr.bf16.mxu0 0
        %1135 = vmatpush1.bf16.xpose.msra.mxu0 0
        %1136 = vmatprep.subr.bf16.mxu0 0
        %1137 = vmatpush1.bf16.xpose.msra.mxu0 0
        %1138 = vmatprep.subr.bf16.mxu0 0
        %1139 = vmatpush1.bf16.xpose.msra.mxu0 0
        %1140 = vmatprep.subr.bf16.mxu0 0
        %1141 = vmatpush1.bf16.xpose.msra.mxu0 0
        %1142 = vmatprep.subr.bf16.mxu0 0
        %1143 = vmatpush1.bf16.xpose.msra.mxu0 0
        %1144 = vmatprep.mubr.bf16.mxu0 0
        %1145 = vmatmul.mubr.bf16.gmra.mrb[0].mxu0 %v330
        %v1146 = vpop.f32.mrb[0].mxu0
        %v1147 = vadd.f32 %v939, %v1146
        %v1148 = vpop.f32.mrb[0].mxu0
        %v1149 = vpop.f32.mrb[0].mxu0
        %v1150 = vpop.f32.mrb[0].mxu0
        %1151 = vdwg.mxu0
        %v1152 = vpack.c.bf16 %v527, %v527
        %v1153 = vpack.c.bf16 %v579, %v579
        %v1154 = vpack.c.bf16 %v631, %v631
        %v1155 = vpack.c.bf16 %v683, %v683
        %v1156 = vpack.c.bf16 %v759, %v759
        %v1157 = vpack.c.bf16 %v811, %v811
        %v1158 = vpack.c.bf16 %v863, %v863
        %v1159 = vpack.c.bf16 %v915, %v915
        %vm1160 = vcmask 261120
        %v1162 = vsel %vm1160, %v1152, 0
        %v1165 = vsel %vm1160, %v1156, 0
        %1167 = vmatprep.subr.bf16.mxu0 0
        %1168 = vmatpush1.bf16.xpose.msra.mxu0 %v1165
        %1169 = vmatprep.subr.bf16.mxu0 0
        %1170 = vmatpush1.bf16.xpose.msra.mxu0 0
        %1171 = vmatprep.subr.bf16.mxu0 0
        %1172 = vmatpush1.bf16.xpose.msra.mxu0 0
        %1173 = vmatprep.subr.bf16.mxu0 0
        %1174 = vmatpush1.bf16.xpose.msra.mxu0 0
        %1175 = vmatprep.subr.bf16.mxu0 0
        %1176 = vmatpush1.bf16.xpose.msra.mxu0 0
        %1177 = vmatprep.subr.bf16.mxu0 0
        %1178 = vmatpush1.bf16.xpose.msra.mxu0 0
        %1179 = vmatprep.subr.bf16.mxu0 0
        %1180 = vmatpush1.bf16.xpose.msra.mxu0 0
        %1181 = vmatprep.subr.bf16.mxu0 0
        %1182 = vmatpush1.bf16.xpose.msra.mxu0 0
        %1183 = vmatprep.subr.bf16.mxu0 0
        %1184 = vmatpush1.bf16.xpose.msra.mxu0 0
        %1185 = vmatprep.subr.bf16.mxu0 0
        %1186 = vmatpush1.bf16.xpose.msra.mxu0 0
        %1187 = vmatprep.subr.bf16.mxu0 0
        %1188 = vmatpush1.bf16.xpose.msra.mxu0 0
        %1189 = vmatprep.subr.bf16.mxu0 0
        %1190 = vmatpush1.bf16.xpose.msra.mxu0 0
        %1191 = vmatprep.subr.bf16.mxu0 0
        %1192 = vmatpush1.bf16.xpose.msra.mxu0 0
        %1193 = vmatprep.subr.bf16.mxu0 0
        %1194 = vmatpush1.bf16.xpose.msra.mxu0 0
        %1195 = vmatprep.subr.bf16.mxu0 0
        %1196 = vmatpush1.bf16.xpose.msra.mxu0 0
        %1197 = vmatprep.subr.bf16.mxu0 0
        %1198 = vmatpush1.bf16.xpose.msra.mxu0 0
        %1199 = vmatprep.mubr.bf16.mxu0 0
        %1200 = vmatmul.mubr.bf16.gmra.mrb[0].mxu0 %v1162
        %v1201 = vpop.f32.mrb[0].mxu0
        %v1202 = vadd.f32 0.0, %v1201
        %v1203 = vpop.f32.mrb[0].mxu0
        %v1204 = vpop.f32.mrb[0].mxu0
        %v1205 = vpop.f32.mrb[0].mxu0
        %1206 = vdwg.mxu0
        %v1208 = vsel %vm1160, %v1153, 0
        %v1211 = vsel %vm1160, %v1157, 0
        %1213 = vmatprep.subr.bf16.mxu0 0
        %1214 = vmatpush1.bf16.xpose.msra.mxu0 %v1211
        %1215 = vmatprep.subr.bf16.mxu0 0
        %1216 = vmatpush1.bf16.xpose.msra.mxu0 0
        %1217 = vmatprep.subr.bf16.mxu0 0
        %1218 = vmatpush1.bf16.xpose.msra.mxu0 0
        %1219 = vmatprep.subr.bf16.mxu0 0
        %1220 = vmatpush1.bf16.xpose.msra.mxu0 0
        %1221 = vmatprep.subr.bf16.mxu0 0
        %1222 = vmatpush1.bf16.xpose.msra.mxu0 0
        %1223 = vmatprep.subr.bf16.mxu0 0
        %1224 = vmatpush1.bf16.xpose.msra.mxu0 0
        %1225 = vmatprep.subr.bf16.mxu0 0
        %1226 = vmatpush1.bf16.xpose.msra.mxu0 0
        %1227 = vmatprep.subr.bf16.mxu0 0
        %1228 = vmatpush1.bf16.xpose.msra.mxu0 0
        %1229 = vmatprep.subr.bf16.mxu0 0
        %1230 = vmatpush1.bf16.xpose.msra.mxu0 0
        %1231 = vmatprep.subr.bf16.mxu0 0
        %1232 = vmatpush1.bf16.xpose.msra.mxu0 0
        %1233 = vmatprep.subr.bf16.mxu0 0
        %1234 = vmatpush1.bf16.xpose.msra.mxu0 0
        %1235 = vmatprep.subr.bf16.mxu0 0
        %1236 = vmatpush1.bf16.xpose.msra.mxu0 0
        %1237 = vmatprep.subr.bf16.mxu0 0
        %1238 = vmatpush1.bf16.xpose.msra.mxu0 0
        %1239 = vmatprep.subr.bf16.mxu0 0
        %1240 = vmatpush1.bf16.xpose.msra.mxu0 0
        %1241 = vmatprep.subr.bf16.mxu0 0
        %1242 = vmatpush1.bf16.xpose.msra.mxu0 0
        %1243 = vmatprep.subr.bf16.mxu0 0
        %1244 = vmatpush1.bf16.xpose.msra.mxu0 0
        %1245 = vmatprep.mubr.bf16.mxu0 0
        %1246 = vmatmul.mubr.bf16.gmra.mrb[0].mxu0 %v1208
        %v1247 = vpop.f32.mrb[0].mxu0
        %v1248 = vadd.f32 0.0, %v1247
        %v1249 = vpop.f32.mrb[0].mxu0
        %v1250 = vpop.f32.mrb[0].mxu0
        %v1251 = vpop.f32.mrb[0].mxu0
        %1252 = vdwg.mxu0
        %v1254 = vsel %vm1160, %v1154, 0
        %v1257 = vsel %vm1160, %v1158, 0
        %1259 = vmatprep.subr.bf16.mxu0 0
        %1260 = vmatpush1.bf16.xpose.msra.mxu0 %v1257
        %1261 = vmatprep.subr.bf16.mxu0 0
        %1262 = vmatpush1.bf16.xpose.msra.mxu0 0
        %1263 = vmatprep.subr.bf16.mxu0 0
        %1264 = vmatpush1.bf16.xpose.msra.mxu0 0
        %1265 = vmatprep.subr.bf16.mxu0 0
        %1266 = vmatpush1.bf16.xpose.msra.mxu0 0
        %1267 = vmatprep.subr.bf16.mxu0 0
        %1268 = vmatpush1.bf16.xpose.msra.mxu0 0
        %1269 = vmatprep.subr.bf16.mxu0 0
        %1270 = vmatpush1.bf16.xpose.msra.mxu0 0
        %1271 = vmatprep.subr.bf16.mxu0 0
        %1272 = vmatpush1.bf16.xpose.msra.mxu0 0
        %1273 = vmatprep.subr.bf16.mxu0 0
        %1274 = vmatpush1.bf16.xpose.msra.mxu0 0
        %1275 = vmatprep.subr.bf16.mxu0 0
        %1276 = vmatpush1.bf16.xpose.msra.mxu0 0
        %1277 = vmatprep.subr.bf16.mxu0 0
        %1278 = vmatpush1.bf16.xpose.msra.mxu0 0
        %1279 = vmatprep.subr.bf16.mxu0 0
        %1280 = vmatpush1.bf16.xpose.msra.mxu0 0
        %1281 = vmatprep.subr.bf16.mxu0 0
        %1282 = vmatpush1.bf16.xpose.msra.mxu0 0
        %1283 = vmatprep.subr.bf16.mxu0 0
        %1284 = vmatpush1.bf16.xpose.msra.mxu0 0
        %1285 = vmatprep.subr.bf16.mxu0 0
        %1286 = vmatpush1.bf16.xpose.msra.mxu0 0
        %1287 = vmatprep.subr.bf16.mxu0 0
        %1288 = vmatpush1.bf16.xpose.msra.mxu0 0
        %1289 = vmatprep.subr.bf16.mxu0 0
        %1290 = vmatpush1.bf16.xpose.msra.mxu0 0
        %1291 = vmatprep.mubr.bf16.mxu0 0
        %1292 = vmatmul.mubr.bf16.gmra.mrb[0].mxu0 %v1254
        %v1293 = vpop.f32.mrb[0].mxu0
        %v1294 = vadd.f32 0.0, %v1293
        %v1295 = vpop.f32.mrb[0].mxu0
        %v1296 = vpop.f32.mrb[0].mxu0
        %v1297 = vpop.f32.mrb[0].mxu0
        %1298 = vdwg.mxu0
        %v1300 = vsel %vm1160, %v1155, 0
        %v1303 = vsel %vm1160, %v1159, 0
        %1305 = vmatprep.subr.bf16.mxu0 0
        %1306 = vmatpush1.bf16.xpose.msra.mxu0 %v1303
        %1307 = vmatprep.subr.bf16.mxu0 0
        %1308 = vmatpush1.bf16.xpose.msra.mxu0 0
        %1309 = vmatprep.subr.bf16.mxu0 0
        %1310 = vmatpush1.bf16.xpose.msra.mxu0 0
        %1311 = vmatprep.subr.bf16.mxu0 0
        %1312 = vmatpush1.bf16.xpose.msra.mxu0 0
        %1313 = vmatprep.subr.bf16.mxu0 0
        %1314 = vmatpush1.bf16.xpose.msra.mxu0 0
        %1315 = vmatprep.subr.bf16.mxu0 0
        %1316 = vmatpush1.bf16.xpose.msra.mxu0 0
        %1317 = vmatprep.subr.bf16.mxu0 0
        %1318 = vmatpush1.bf16.xpose.msra.mxu0 0
        %1319 = vmatprep.subr.bf16.mxu0 0
        %1320 = vmatpush1.bf16.xpose.msra.mxu0 0
        %1321 = vmatprep.subr.bf16.mxu0 0
        %1322 = vmatpush1.bf16.xpose.msra.mxu0 0
        %1323 = vmatprep.subr.bf16.mxu0 0
        %1324 = vmatpush1.bf16.xpose.msra.mxu0 0
        %1325 = vmatprep.subr.bf16.mxu0 0
        %1326 = vmatpush1.bf16.xpose.msra.mxu0 0
        %1327 = vmatprep.subr.bf16.mxu0 0
        %1328 = vmatpush1.bf16.xpose.msra.mxu0 0
        %1329 = vmatprep.subr.bf16.mxu0 0
        %1330 = vmatpush1.bf16.xpose.msra.mxu0 0
        %1331 = vmatprep.subr.bf16.mxu0 0
        %1332 = vmatpush1.bf16.xpose.msra.mxu0 0
        %1333 = vmatprep.subr.bf16.mxu0 0
        %1334 = vmatpush1.bf16.xpose.msra.mxu0 0
        %1335 = vmatprep.subr.bf16.mxu0 0
        %1336 = vmatpush1.bf16.xpose.msra.mxu0 0
        %1337 = vmatprep.mubr.bf16.mxu0 0
        %1338 = vmatmul.mubr.bf16.gmra.mrb[0].mxu0 %v1300
        %v1339 = vpop.f32.mrb[0].mxu0
        %v1340 = vadd.f32 0.0, %v1339
        %v1341 = vpop.f32.mrb[0].mxu0
        %v1342 = vpop.f32.mrb[0].mxu0
        %v1343 = vpop.f32.mrb[0].mxu0
        %1344 = vdwg.mxu0
        %vm1345 = vcmask 64512
        %v1346 = vsel %vm1345, %v1202, -inf
        %1347 = vmax.xlane.f32.xlu0 %v1346
        %v1348 = vpop.xlane.xlu0 %1347
        %v1349 = vsel %vm1345, %v1248, -inf
        %1350 = vmax.xlane.f32.xlu0 %v1349
        %v1351 = vpop.xlane.xlu0 %1350
        %v1352 = vsel %vm1345, %v1294, -inf
        %1353 = vmax.xlane.f32.xlu0 %v1352
        %v1354 = vpop.xlane.xlu0 %1353
        %v1355 = vsel %vm1345, %v1340, -inf
        %1356 = vmax.xlane.f32.xlu0 %v1355
        %v1357 = vpop.xlane.xlu0 %1356
        %v1358 = vsub.f32 %v1202, %v1348
        %v1359 = vsub.f32 %v1248, %v1351
        %v1360 = vsub.f32 %v1294, %v1354
        %v1361 = vsub.f32 %v1340, %v1357
        %v1362 = vmul.f32 %v1358, 1.442695
        %v1363 = vpow.pop %v1362
        %v1364 = vmul.f32 %v1359, 1.442695
        %v1365 = vpow.pop %v1364
        %v1366 = vmul.f32 %v1360, 1.442695
        %v1367 = vpow.pop %v1366
        %v1368 = vmul.f32 %v1361, 1.442695
        %v1369 = vpow.pop %v1368
        %v1370 = vsel %vm1345, %v1363, 0.0
        %1371 = vadd.xlane.f32.xlu0 %v1370
        %v1372 = vpop.xlane.xlu0 %1371
        %v1373 = vsel %vm1345, %v1365, 0.0
        %1374 = vadd.xlane.f32.xlu0 %v1373
        %v1375 = vpop.xlane.xlu0 %1374
        %v1376 = vsel %vm1345, %v1367, 0.0
        %1377 = vadd.xlane.f32.xlu0 %v1376
        %v1378 = vpop.xlane.xlu0 %1377
        %v1379 = vsel %vm1345, %v1369, 0.0
        %1380 = vadd.xlane.f32.xlu0 %v1379
        %v1381 = vpop.xlane.xlu0 %1380
        %v1382 = vpack.c.bf16 %v1363, %v1363
        %v1383 = vpack.c.bf16 %v1365, %v1365
        %v1384 = vpack.c.bf16 %v1367, %v1367
        %v1385 = vpack.c.bf16 %v1369, %v1369
        %v1386 = vpack.c.bf16 %v991, %v991
        %v1387 = vpack.c.bf16 %v1043, %v1043
        %v1388 = vpack.c.bf16 %v1095, %v1095
        %v1389 = vpack.c.bf16 %v1147, %v1147
        %v1391 = vsel %vm1345, %v1382, 0
        %vm1393 = vcmask 1043456
        %v1395 = vsel %vm1393, %v1386, 0
        %1397 = vmatprep.subr.bf16.mxu0 0
        %1398 = vmatpush1.bf16.msra.mxu0 %v1395
        %1399 = vmatprep.subr.bf16.mxu0 0
        %1400 = vmatpush1.bf16.msra.mxu0 0
        %1401 = vmatprep.subr.bf16.mxu0 0
        %1402 = vmatpush1.bf16.msra.mxu0 0
        %1403 = vmatprep.subr.bf16.mxu0 0
        %1404 = vmatpush1.bf16.msra.mxu0 0
        %1405 = vmatprep.subr.bf16.mxu0 0
        %1406 = vmatpush1.bf16.msra.mxu0 0
        %1407 = vmatprep.subr.bf16.mxu0 0
        %1408 = vmatpush1.bf16.msra.mxu0 0
        %1409 = vmatprep.subr.bf16.mxu0 0
        %1410 = vmatpush1.bf16.msra.mxu0 0
        %1411 = vmatprep.subr.bf16.mxu0 0
        %1412 = vmatpush1.bf16.msra.mxu0 0
        %1413 = vmatprep.subr.bf16.mxu0 0
        %1414 = vmatpush1.bf16.msra.mxu0 0
        %1415 = vmatprep.subr.bf16.mxu0 0
        %1416 = vmatpush1.bf16.msra.mxu0 0
        %1417 = vmatprep.subr.bf16.mxu0 0
        %1418 = vmatpush1.bf16.msra.mxu0 0
        %1419 = vmatprep.subr.bf16.mxu0 0
        %1420 = vmatpush1.bf16.msra.mxu0 0
        %1421 = vmatprep.subr.bf16.mxu0 0
        %1422 = vmatpush1.bf16.msra.mxu0 0
        %1423 = vmatprep.subr.bf16.mxu0 0
        %1424 = vmatpush1.bf16.msra.mxu0 0
        %1425 = vmatprep.subr.bf16.mxu0 0
        %1426 = vmatpush1.bf16.msra.mxu0 0
        %1427 = vmatprep.subr.bf16.mxu0 0
        %1428 = vmatpush1.bf16.msra.mxu0 0
        %1429 = vmatprep.mubr.bf16.mxu0 0
        %1430 = vmatmul.mubr.bf16.gmra.mrb[0].mxu0 %v1391
        %v1431 = vpop.f32.mrb[0].mxu0
        %v1432 = vadd.f32 0.0, %v1431
        %v1433 = vpop.f32.mrb[0].mxu0
        %v1434 = vpop.f32.mrb[0].mxu0
        %v1435 = vpop.f32.mrb[0].mxu0
        %1436 = vdwg.mxu0
        %v1438 = vsel %vm1345, %v1383, 0
        %v1441 = vsel %vm1393, %v1387, 0
        %1443 = vmatprep.subr.bf16.mxu0 0
        %1444 = vmatpush1.bf16.msra.mxu0 %v1441
        %1445 = vmatprep.subr.bf16.mxu0 0
        %1446 = vmatpush1.bf16.msra.mxu0 0
        %1447 = vmatprep.subr.bf16.mxu0 0
        %1448 = vmatpush1.bf16.msra.mxu0 0
        %1449 = vmatprep.subr.bf16.mxu0 0
        %1450 = vmatpush1.bf16.msra.mxu0 0
        %1451 = vmatprep.subr.bf16.mxu0 0
        %1452 = vmatpush1.bf16.msra.mxu0 0
        %1453 = vmatprep.subr.bf16.mxu0 0
        %1454 = vmatpush1.bf16.msra.mxu0 0
        %1455 = vmatprep.subr.bf16.mxu0 0
        %1456 = vmatpush1.bf16.msra.mxu0 0
        %1457 = vmatprep.subr.bf16.mxu0 0
        %1458 = vmatpush1.bf16.msra.mxu0 0
        %1459 = vmatprep.subr.bf16.mxu0 0
        %1460 = vmatpush1.bf16.msra.mxu0 0
        %1461 = vmatprep.subr.bf16.mxu0 0
        %1462 = vmatpush1.bf16.msra.mxu0 0
        %1463 = vmatprep.subr.bf16.mxu0 0
        %1464 = vmatpush1.bf16.msra.mxu0 0
        %1465 = vmatprep.subr.bf16.mxu0 0
        %1466 = vmatpush1.bf16.msra.mxu0 0
        %1467 = vmatprep.subr.bf16.mxu0 0
        %1468 = vmatpush1.bf16.msra.mxu0 0
        %1469 = vmatprep.subr.bf16.mxu0 0
        %1470 = vmatpush1.bf16.msra.mxu0 0
        %1471 = vmatprep.subr.bf16.mxu0 0
        %1472 = vmatpush1.bf16.msra.mxu0 0
        %1473 = vmatprep.subr.bf16.mxu0 0
        %1474 = vmatpush1.bf16.msra.mxu0 0
        %1475 = vmatprep.mubr.bf16.mxu0 0
        %1476 = vmatmul.mubr.bf16.gmra.mrb[0].mxu0 %v1438
        %v1477 = vpop.f32.mrb[0].mxu0
        %v1478 = vadd.f32 0.0, %v1477
        %v1479 = vpop.f32.mrb[0].mxu0
        %v1480 = vpop.f32.mrb[0].mxu0
        %v1481 = vpop.f32.mrb[0].mxu0
        %1482 = vdwg.mxu0
        %v1484 = vsel %vm1345, %v1384, 0
        %v1487 = vsel %vm1393, %v1388, 0
        %1489 = vmatprep.subr.bf16.mxu0 0
        %1490 = vmatpush1.bf16.msra.mxu0 %v1487
        %1491 = vmatprep.subr.bf16.mxu0 0
        %1492 = vmatpush1.bf16.msra.mxu0 0
        %1493 = vmatprep.subr.bf16.mxu0 0
        %1494 = vmatpush1.bf16.msra.mxu0 0
        %1495 = vmatprep.subr.bf16.mxu0 0
        %1496 = vmatpush1.bf16.msra.mxu0 0
        %1497 = vmatprep.subr.bf16.mxu0 0
        %1498 = vmatpush1.bf16.msra.mxu0 0
        %1499 = vmatprep.subr.bf16.mxu0 0
        %1500 = vmatpush1.bf16.msra.mxu0 0
        %1501 = vmatprep.subr.bf16.mxu0 0
        %1502 = vmatpush1.bf16.msra.mxu0 0
        %1503 = vmatprep.subr.bf16.mxu0 0
        %1504 = vmatpush1.bf16.msra.mxu0 0
        %1505 = vmatprep.subr.bf16.mxu0 0
        %1506 = vmatpush1.bf16.msra.mxu0 0
        %1507 = vmatprep.subr.bf16.mxu0 0
        %1508 = vmatpush1.bf16.msra.mxu0 0
        %1509 = vmatprep.subr.bf16.mxu0 0
        %1510 = vmatpush1.bf16.msra.mxu0 0
        %1511 = vmatprep.subr.bf16.mxu0 0
        %1512 = vmatpush1.bf16.msra.mxu0 0
        %1513 = vmatprep.subr.bf16.mxu0 0
        %1514 = vmatpush1.bf16.msra.mxu0 0
        %1515 = vmatprep.subr.bf16.mxu0 0
        %1516 = vmatpush1.bf16.msra.mxu0 0
        %1517 = vmatprep.subr.bf16.mxu0 0
        %1518 = vmatpush1.bf16.msra.mxu0 0
        %1519 = vmatprep.subr.bf16.mxu0 0
        %1520 = vmatpush1.bf16.msra.mxu0 0
        %1521 = vmatprep.mubr.bf16.mxu0 0
        %1522 = vmatmul.mubr.bf16.gmra.mrb[0].mxu0 %v1484
        %v1523 = vpop.f32.mrb[0].mxu0
        %v1524 = vadd.f32 0.0, %v1523
        %v1525 = vpop.f32.mrb[0].mxu0
        %v1526 = vpop.f32.mrb[0].mxu0
        %v1527 = vpop.f32.mrb[0].mxu0
        %1528 = vdwg.mxu0
        %v1530 = vsel %vm1345, %v1385, 0
        %v1533 = vsel %vm1393, %v1389, 0
        %1535 = vmatprep.subr.bf16.mxu0 0
        %1536 = vmatpush1.bf16.msra.mxu0 %v1533
        %1537 = vmatprep.subr.bf16.mxu0 0
        %1538 = vmatpush1.bf16.msra.mxu0 0
        %1539 = vmatprep.subr.bf16.mxu0 0
        %1540 = vmatpush1.bf16.msra.mxu0 0
        %1541 = vmatprep.subr.bf16.mxu0 0
        %1542 = vmatpush1.bf16.msra.mxu0 0
        %1543 = vmatprep.subr.bf16.mxu0 0
        %1544 = vmatpush1.bf16.msra.mxu0 0
        %1545 = vmatprep.subr.bf16.mxu0 0
        %1546 = vmatpush1.bf16.msra.mxu0 0
        %1547 = vmatprep.subr.bf16.mxu0 0
        %1548 = vmatpush1.bf16.msra.mxu0 0
        %1549 = vmatprep.subr.bf16.mxu0 0
        %1550 = vmatpush1.bf16.msra.mxu0 0
        %1551 = vmatprep.subr.bf16.mxu0 0
        %1552 = vmatpush1.bf16.msra.mxu0 0
        %1553 = vmatprep.subr.bf16.mxu0 0
        %1554 = vmatpush1.bf16.msra.mxu0 0
        %1555 = vmatprep.subr.bf16.mxu0 0
        %1556 = vmatpush1.bf16.msra.mxu0 0
        %1557 = vmatprep.subr.bf16.mxu0 0
        %1558 = vmatpush1.bf16.msra.mxu0 0
        %1559 = vmatprep.subr.bf16.mxu0 0
        %1560 = vmatpush1.bf16.msra.mxu0 0
        %1561 = vmatprep.subr.bf16.mxu0 0
        %1562 = vmatpush1.bf16.msra.mxu0 0
        %1563 = vmatprep.subr.bf16.mxu0 0
        %1564 = vmatpush1.bf16.msra.mxu0 0
        %1565 = vmatprep.subr.bf16.mxu0 0
        %1566 = vmatpush1.bf16.msra.mxu0 0
        %1567 = vmatprep.mubr.bf16.mxu0 0
        %1568 = vmatmul.mubr.bf16.gmra.mrb[0].mxu0 %v1530
        %v1569 = vpop.f32.mrb[0].mxu0
        %v1570 = vadd.f32 0.0, %v1569
        %v1571 = vpop.f32.mrb[0].mxu0
        %v1572 = vpop.f32.mrb[0].mxu0
        %v1573 = vpop.f32.mrb[0].mxu0
        %1574 = vdwg.mxu0
        %v1575 = vrcp.pop %v1372
        %v1576 = vrcp.pop %v1375
        %v1577 = vrcp.pop %v1378
        %v1578 = vrcp.pop %v1381
        %v1579 = vmul.f32 %v1432, %v1575
        %v1580 = vmul.f32 %v1478, %v1576
        %v1581 = vmul.f32 %v1524, %v1577
        %v1582 = vmul.f32 %v1570, %v1578
        %v1583 = vpack.c.bf16 %v1579, %v1579
        %v1584 = vpack.c.bf16 %v1580, %v1580
        %v1585 = vpack.c.bf16 %v1581, %v1581
        %v1586 = vpack.c.bf16 %v1582, %v1582
        %v1603 = vunpack.c.l.b16 %v391
        %v1604 = vunpack.c.l.b16 %v392
        %v1605 = vunpack.c.l.b16 %v393
        %v1606 = vunpack.c.l.b16 %v394
        %v1607 = vunpack.c.l.b16 %v395
        %v1608 = vunpack.c.l.b16 %v396
        %v1609 = vunpack.c.l.b16 %v397
        %v1610 = vunpack.c.l.b16 %v398
        %v1611 = vunpack.c.l.b16 %v399
        %v1612 = vunpack.c.l.b16 %v400
        %v1613 = vunpack.c.l.b16 %v401
        %v1614 = vunpack.c.l.b16 %v402
        %v1615 = vunpack.c.l.b16 %v403
        %v1616 = vunpack.c.l.b16 %v404
        %v1617 = vunpack.c.l.b16 %v405
        %v1618 = vunpack.c.l.b16 %v406
        %v1619 = vpack.c.b16 %v1604, %v1603
        %v1620 = vpack.c.b16 %v1606, %v1605
        %v1621 = vpack.c.b16 %v1608, %v1607
        %v1622 = vpack.c.b16 %v1610, %v1609
        %v1623 = vpack.c.b16 %v1612, %v1611
        %v1624 = vpack.c.b16 %v1614, %v1613
        %v1625 = vpack.c.b16 %v1616, %v1615
        %v1626 = vpack.c.b16 %v1618, %v1617
        %v1628 = vsel %vm1160, %v1583, 0
        %v1631 = vsel %vm1160, %v1619, 0
        %v1634 = vsel %vm1160, %v1620, 0
        %v1637 = vsel %vm1160, %v1621, 0
        %v1640 = vsel %vm1160, %v1622, 0
        %v1643 = vsel %vm1160, %v1623, 0
        %v1646 = vsel %vm1160, %v1624, 0
        %v1649 = vsel %vm1160, %v1625, 0
        %v1652 = vsel %vm1160, %v1626, 0
        %1654 = vmatprep.subr.bf16.mxu0 0
        %1655 = vmatpush1.bf16.xpose.msra.mxu0 %v1631
        %1656 = vmatprep.subr.bf16.mxu0 0
        %1657 = vmatpush1.bf16.xpose.msra.mxu0 %v1634
        %1658 = vmatprep.subr.bf16.mxu0 0
        %1659 = vmatpush1.bf16.xpose.msra.mxu0 %v1637
        %1660 = vmatprep.subr.bf16.mxu0 0
        %1661 = vmatpush1.bf16.xpose.msra.mxu0 %v1640
        %1662 = vmatprep.subr.bf16.mxu0 0
        %1663 = vmatpush1.bf16.xpose.msra.mxu0 %v1643
        %1664 = vmatprep.subr.bf16.mxu0 0
        %1665 = vmatpush1.bf16.xpose.msra.mxu0 %v1646
        %1666 = vmatprep.subr.bf16.mxu0 0
        %1667 = vmatpush1.bf16.xpose.msra.mxu0 %v1649
        %1668 = vmatprep.subr.bf16.mxu0 0
        %1669 = vmatpush1.bf16.xpose.msra.mxu0 %v1652
        %1670 = vmatprep.subr.bf16.mxu0 0
        %1671 = vmatpush1.bf16.xpose.msra.mxu0 0
        %1672 = vmatprep.subr.bf16.mxu0 0
        %1673 = vmatpush1.bf16.xpose.msra.mxu0 0
        %1674 = vmatprep.subr.bf16.mxu0 0
        %1675 = vmatpush1.bf16.xpose.msra.mxu0 0
        %1676 = vmatprep.subr.bf16.mxu0 0
        %1677 = vmatpush1.bf16.xpose.msra.mxu0 0
        %1678 = vmatprep.subr.bf16.mxu0 0
        %1679 = vmatpush1.bf16.xpose.msra.mxu0 0
        %1680 = vmatprep.subr.bf16.mxu0 0
        %1681 = vmatpush1.bf16.xpose.msra.mxu0 0
        %1682 = vmatprep.subr.bf16.mxu0 0
        %1683 = vmatpush1.bf16.xpose.msra.mxu0 0
        %1684 = vmatprep.subr.bf16.mxu0 0
        %1685 = vmatpush1.bf16.xpose.msra.mxu0 0
        %1686 = vmatprep.mubr.bf16.mxu0 0
        %1687 = vmatmul.mubr.bf16.gmra.mrb[0].mxu0 %v1628
        %v1688 = vpop.f32.mrb[0].mxu0
        %v1689 = vadd.f32 0.0, %v1688
        %v1690 = vpop.f32.mrb[0].mxu0
        %v1691 = vpop.f32.mrb[0].mxu0
        %v1692 = vpop.f32.mrb[0].mxu0
        %1693 = vdwg.mxu0
        %v1710 = vunpack.c.l.b16 %v407
        %v1711 = vunpack.c.l.b16 %v408
        %v1712 = vunpack.c.l.b16 %v409
        %v1713 = vunpack.c.l.b16 %v410
        %v1714 = vunpack.c.l.b16 %v411
        %v1715 = vunpack.c.l.b16 %v412
        %v1716 = vunpack.c.l.b16 %v413
        %v1717 = vunpack.c.l.b16 %v414
        %v1718 = vunpack.c.l.b16 %v415
        %v1719 = vunpack.c.l.b16 %v416
        %v1720 = vunpack.c.l.b16 %v417
        %v1721 = vunpack.c.l.b16 %v418
        %v1722 = vunpack.c.l.b16 %v419
        %v1723 = vunpack.c.l.b16 %v420
        %v1724 = vunpack.c.l.b16 %v421
        %v1725 = vunpack.c.l.b16 %v422
        %v1726 = vpack.c.b16 %v1711, %v1710
        %v1727 = vpack.c.b16 %v1713, %v1712
        %v1728 = vpack.c.b16 %v1715, %v1714
        %v1729 = vpack.c.b16 %v1717, %v1716
        %v1730 = vpack.c.b16 %v1719, %v1718
        %v1731 = vpack.c.b16 %v1721, %v1720
        %v1732 = vpack.c.b16 %v1723, %v1722
        %v1733 = vpack.c.b16 %v1725, %v1724
        %v1735 = vsel %vm1160, %v1584, 0
        %v1738 = vsel %vm1160, %v1726, 0
        %v1741 = vsel %vm1160, %v1727, 0
        %v1744 = vsel %vm1160, %v1728, 0
        %v1747 = vsel %vm1160, %v1729, 0
        %v1750 = vsel %vm1160, %v1730, 0
        %v1753 = vsel %vm1160, %v1731, 0
        %v1756 = vsel %vm1160, %v1732, 0
        %v1759 = vsel %vm1160, %v1733, 0
        %1761 = vmatprep.subr.bf16.mxu0 0
        %1762 = vmatpush1.bf16.xpose.msra.mxu0 %v1738
        %1763 = vmatprep.subr.bf16.mxu0 0
        %1764 = vmatpush1.bf16.xpose.msra.mxu0 %v1741
        %1765 = vmatprep.subr.bf16.mxu0 0
        %1766 = vmatpush1.bf16.xpose.msra.mxu0 %v1744
        %1767 = vmatprep.subr.bf16.mxu0 0
        %1768 = vmatpush1.bf16.xpose.msra.mxu0 %v1747
        %1769 = vmatprep.subr.bf16.mxu0 0
        %1770 = vmatpush1.bf16.xpose.msra.mxu0 %v1750
        %1771 = vmatprep.subr.bf16.mxu0 0
        %1772 = vmatpush1.bf16.xpose.msra.mxu0 %v1753
        %1773 = vmatprep.subr.bf16.mxu0 0
        %1774 = vmatpush1.bf16.xpose.msra.mxu0 %v1756
        %1775 = vmatprep.subr.bf16.mxu0 0
        %1776 = vmatpush1.bf16.xpose.msra.mxu0 %v1759
        %1777 = vmatprep.subr.bf16.mxu0 0
        %1778 = vmatpush1.bf16.xpose.msra.mxu0 0
        %1779 = vmatprep.subr.bf16.mxu0 0
        %1780 = vmatpush1.bf16.xpose.msra.mxu0 0
        %1781 = vmatprep.subr.bf16.mxu0 0
        %1782 = vmatpush1.bf16.xpose.msra.mxu0 0
        %1783 = vmatprep.subr.bf16.mxu0 0
        %1784 = vmatpush1.bf16.xpose.msra.mxu0 0
        %1785 = vmatprep.subr.bf16.mxu0 0
        %1786 = vmatpush1.bf16.xpose.msra.mxu0 0
        %1787 = vmatprep.subr.bf16.mxu0 0
        %1788 = vmatpush1.bf16.xpose.msra.mxu0 0
        %1789 = vmatprep.subr.bf16.mxu0 0
        %1790 = vmatpush1.bf16.xpose.msra.mxu0 0
        %1791 = vmatprep.subr.bf16.mxu0 0
        %1792 = vmatpush1.bf16.xpose.msra.mxu0 0
        %1793 = vmatprep.mubr.bf16.mxu0 0
        %1794 = vmatmul.mubr.bf16.gmra.mrb[0].mxu0 %v1735
        %v1795 = vpop.f32.mrb[0].mxu0
        %v1796 = vadd.f32 0.0, %v1795
        %v1797 = vpop.f32.mrb[0].mxu0
        %v1798 = vpop.f32.mrb[0].mxu0
        %v1799 = vpop.f32.mrb[0].mxu0
        %1800 = vdwg.mxu0
        %v1817 = vunpack.c.l.b16 %v423
        %v1818 = vunpack.c.l.b16 %v424
        %v1819 = vunpack.c.l.b16 %v425
        %v1820 = vunpack.c.l.b16 %v426
        %v1821 = vunpack.c.l.b16 %v427
        %v1822 = vunpack.c.l.b16 %v428
        %v1823 = vunpack.c.l.b16 %v429
        %v1824 = vunpack.c.l.b16 %v430
        %v1825 = vunpack.c.l.b16 %v431
        %v1826 = vunpack.c.l.b16 %v432
        %v1827 = vunpack.c.l.b16 %v433
        %v1828 = vunpack.c.l.b16 %v434
        %v1829 = vunpack.c.l.b16 %v435
        %v1830 = vunpack.c.l.b16 %v436
        %v1831 = vunpack.c.l.b16 %v437
        %v1832 = vunpack.c.l.b16 %v438
        %v1833 = vpack.c.b16 %v1818, %v1817
        %v1834 = vpack.c.b16 %v1820, %v1819
        %v1835 = vpack.c.b16 %v1822, %v1821
        %v1836 = vpack.c.b16 %v1824, %v1823
        %v1837 = vpack.c.b16 %v1826, %v1825
        %v1838 = vpack.c.b16 %v1828, %v1827
        %v1839 = vpack.c.b16 %v1830, %v1829
        %v1840 = vpack.c.b16 %v1832, %v1831
        %v1842 = vsel %vm1160, %v1585, 0
        %v1845 = vsel %vm1160, %v1833, 0
        %v1848 = vsel %vm1160, %v1834, 0
        %v1851 = vsel %vm1160, %v1835, 0
        %v1854 = vsel %vm1160, %v1836, 0
        %v1857 = vsel %vm1160, %v1837, 0
        %v1860 = vsel %vm1160, %v1838, 0
        %v1863 = vsel %vm1160, %v1839, 0
        %v1866 = vsel %vm1160, %v1840, 0
        %1868 = vmatprep.subr.bf16.mxu0 0
        %1869 = vmatpush1.bf16.xpose.msra.mxu0 %v1845
        %1870 = vmatprep.subr.bf16.mxu0 0
        %1871 = vmatpush1.bf16.xpose.msra.mxu0 %v1848
        %1872 = vmatprep.subr.bf16.mxu0 0
        %1873 = vmatpush1.bf16.xpose.msra.mxu0 %v1851
        %1874 = vmatprep.subr.bf16.mxu0 0
        %1875 = vmatpush1.bf16.xpose.msra.mxu0 %v1854
        %1876 = vmatprep.subr.bf16.mxu0 0
        %1877 = vmatpush1.bf16.xpose.msra.mxu0 %v1857
        %1878 = vmatprep.subr.bf16.mxu0 0
        %1879 = vmatpush1.bf16.xpose.msra.mxu0 %v1860
        %1880 = vmatprep.subr.bf16.mxu0 0
        %1881 = vmatpush1.bf16.xpose.msra.mxu0 %v1863
        %1882 = vmatprep.subr.bf16.mxu0 0
        %1883 = vmatpush1.bf16.xpose.msra.mxu0 %v1866
        %1884 = vmatprep.subr.bf16.mxu0 0
        %1885 = vmatpush1.bf16.xpose.msra.mxu0 0
        %1886 = vmatprep.subr.bf16.mxu0 0
        %1887 = vmatpush1.bf16.xpose.msra.mxu0 0
        %1888 = vmatprep.subr.bf16.mxu0 0
        %1889 = vmatpush1.bf16.xpose.msra.mxu0 0
        %1890 = vmatprep.subr.bf16.mxu0 0
        %1891 = vmatpush1.bf16.xpose.msra.mxu0 0
        %1892 = vmatprep.subr.bf16.mxu0 0
        %1893 = vmatpush1.bf16.xpose.msra.mxu0 0
        %1894 = vmatprep.subr.bf16.mxu0 0
        %1895 = vmatpush1.bf16.xpose.msra.mxu0 0
        %1896 = vmatprep.subr.bf16.mxu0 0
        %1897 = vmatpush1.bf16.xpose.msra.mxu0 0
        %1898 = vmatprep.subr.bf16.mxu0 0
        %1899 = vmatpush1.bf16.xpose.msra.mxu0 0
        %1900 = vmatprep.mubr.bf16.mxu0 0
        %1901 = vmatmul.mubr.bf16.gmra.mrb[0].mxu0 %v1842
        %v1902 = vpop.f32.mrb[0].mxu0
        %v1903 = vadd.f32 0.0, %v1902
        %v1904 = vpop.f32.mrb[0].mxu0
        %v1905 = vpop.f32.mrb[0].mxu0
        %v1906 = vpop.f32.mrb[0].mxu0
        %1907 = vdwg.mxu0
        %v1924 = vunpack.c.l.b16 %v439
        %v1925 = vunpack.c.l.b16 %v440
        %v1926 = vunpack.c.l.b16 %v441
        %v1927 = vunpack.c.l.b16 %v442
        %v1928 = vunpack.c.l.b16 %v443
        %v1929 = vunpack.c.l.b16 %v444
        %v1930 = vunpack.c.l.b16 %v445
        %v1931 = vunpack.c.l.b16 %v446
        %v1932 = vunpack.c.l.b16 %v447
        %v1933 = vunpack.c.l.b16 %v448
        %v1934 = vunpack.c.l.b16 %v449
        %v1935 = vunpack.c.l.b16 %v450
        %v1936 = vunpack.c.l.b16 %v451
        %v1937 = vunpack.c.l.b16 %v452
        %v1938 = vunpack.c.l.b16 %v453
        %v1939 = vunpack.c.l.b16 %v454
        %v1940 = vpack.c.b16 %v1925, %v1924
        %v1941 = vpack.c.b16 %v1927, %v1926
        %v1942 = vpack.c.b16 %v1929, %v1928
        %v1943 = vpack.c.b16 %v1931, %v1930
        %v1944 = vpack.c.b16 %v1933, %v1932
        %v1945 = vpack.c.b16 %v1935, %v1934
        %v1946 = vpack.c.b16 %v1937, %v1936
        %v1947 = vpack.c.b16 %v1939, %v1938
        %v1949 = vsel %vm1160, %v1586, 0
        %v1952 = vsel %vm1160, %v1940, 0
        %v1955 = vsel %vm1160, %v1941, 0
        %v1958 = vsel %vm1160, %v1942, 0
        %v1961 = vsel %vm1160, %v1943, 0
        %v1964 = vsel %vm1160, %v1944, 0
        %v1967 = vsel %vm1160, %v1945, 0
        %v1970 = vsel %vm1160, %v1946, 0
        %v1973 = vsel %vm1160, %v1947, 0
        %1975 = vmatprep.subr.bf16.mxu0 0
        %1976 = vmatpush1.bf16.xpose.msra.mxu0 %v1952
        %1977 = vmatprep.subr.bf16.mxu0 0
        %1978 = vmatpush1.bf16.xpose.msra.mxu0 %v1955
        %1979 = vmatprep.subr.bf16.mxu0 0
        %1980 = vmatpush1.bf16.xpose.msra.mxu0 %v1958
        %1981 = vmatprep.subr.bf16.mxu0 0
        %1982 = vmatpush1.bf16.xpose.msra.mxu0 %v1961
        %1983 = vmatprep.subr.bf16.mxu0 0
        %1984 = vmatpush1.bf16.xpose.msra.mxu0 %v1964
        %1985 = vmatprep.subr.bf16.mxu0 0
        %1986 = vmatpush1.bf16.xpose.msra.mxu0 %v1967
        %1987 = vmatprep.subr.bf16.mxu0 0
        %1988 = vmatpush1.bf16.xpose.msra.mxu0 %v1970
        %1989 = vmatprep.subr.bf16.mxu0 0
        %1990 = vmatpush1.bf16.xpose.msra.mxu0 %v1973
        %1991 = vmatprep.subr.bf16.mxu0 0
        %1992 = vmatpush1.bf16.xpose.msra.mxu0 0
        %1993 = vmatprep.subr.bf16.mxu0 0
        %1994 = vmatpush1.bf16.xpose.msra.mxu0 0
        %1995 = vmatprep.subr.bf16.mxu0 0
        %1996 = vmatpush1.bf16.xpose.msra.mxu0 0
        %1997 = vmatprep.subr.bf16.mxu0 0
        %1998 = vmatpush1.bf16.xpose.msra.mxu0 0
        %1999 = vmatprep.subr.bf16.mxu0 0
        %2000 = vmatpush1.bf16.xpose.msra.mxu0 0
        %2001 = vmatprep.subr.bf16.mxu0 0
        %2002 = vmatpush1.bf16.xpose.msra.mxu0 0
        %2003 = vmatprep.subr.bf16.mxu0 0
        %2004 = vmatpush1.bf16.xpose.msra.mxu0 0
        %2005 = vmatprep.subr.bf16.mxu0 0
        %2006 = vmatpush1.bf16.xpose.msra.mxu0 0
        %2007 = vmatprep.mubr.bf16.mxu0 0
        %2008 = vmatmul.mubr.bf16.gmra.mrb[0].mxu0 %v1949
        %v2009 = vpop.f32.mrb[0].mxu0
        %v2010 = vadd.f32 0.0, %v2009
        %v2011 = vpop.f32.mrb[0].mxu0
        %v2012 = vpop.f32.mrb[0].mxu0
        %v2013 = vpop.f32.mrb[0].mxu0
        %2014 = vdwg.mxu0
        %v2015 = vadd.f32 %v1689, %v1796
        %v2016 = vadd.f32 %v2015, %v1903
        %v2017 = vadd.f32 %v2016, %v2010
        %v2019 = vlaneseq
        %v2020 = vshrl.u32 %v2019, 7
        %v2021 = vsub.s32 0, %v2020
        %v2022 = vrot.slane %v455, %v2021
        %v2024 = vadd.f32 %v2017, %v2022
        %2025 = vst [vmem:[%s323] sm:$0xff] %v2024
        %s2026 = sand.u32 %s225, 1
        %s2027 = scalar_lea.sflag [#allocation3], %s2026
        %s2028 = sand.u32 %s225, 1
        %s2029 = smul.addr %s2028, 8
        %s2030 = scalar_lea.vmem [#allocation2], %s2029
        // Predicated region
        $region57: #{mha_self_attention.1} parent=55 // pred_check
          %p2031 = pneg %p235
        $region58: #{mha_self_attention.1} parent=55 // pred_check_branch
          %2033 = sbr.rel (%p2031) target = $region60
        $region59: #{mha_self_attention.1} parent=55 // pred_region
          %s2035 = ssub.s32 128, 128
          %2036 = vsyncadd %s2027, %s2035
          %s2037 = smul.addr %s23, 128
          %s2038 = scalar_lea.hbm %s9, %s2037
          %s2040 = sshll.u32 %s2030, 4
          %s2041 = int_to_ptr.vmem [resolvable:$true] %s2040
          %2043 = dma.vmem_to_hbm [thread:$0]  %s2041, 128, %s2038, %s2027
        $region60: #{mha_self_attention.1} parent=55 // pred_fallthru
          _
      $region56: #{mha_self_attention.1} parent=5 // pred_fallthru
        _
      %p2044 = scmp.le.s32.totalorder 2, %s18
      // Predicated region
      $region61: #{mha_self_attention.1} parent=5 // pred_check
        %p2045 = pneg %p2044
      $region62: #{mha_self_attention.1} parent=5 // pred_check_branch
        %2047 = sbr.rel (%p2045) target = $region64
      $region63: #{mha_self_attention.1} parent=5 // pred_region
        %s2048 = ssub.s32 %s18, 2
        // Predicated region
        $region65: #{mha_self_attention.1} parent=63 // pred_check
          %p2049 = pneg %p241
        $region66: #{mha_self_attention.1} parent=63 // pred_check_branch
          %2051 = sbr.rel (%p2049) target = $region68
        $region67: #{mha_self_attention.1} parent=63 // pred_region
          %s2052 = sand.u32 %s226, 1
          %s2053 = scalar_lea.sflag [#allocation3], %s2052
          %s2054 = sand.u32 %s226, 1
          %s2055 = smul.addr %s2054, 8
          %s2056 = scalar_lea.vmem [#allocation2], %s2055
          %2057 = dma.done %s2053, 128
        $region68: #{mha_self_attention.1} parent=63 // pred_fallthru
          _
      $region64: #{mha_self_attention.1} parent=5 // pred_fallthru
        _
    $region6: #{mha_self_attention.1} parent=1 // loop_footer
      %s22 = sadd.s32 1, %s18
    $region7: #{mha_self_attention.1} parent=1 // loop_footer_branch
      %17 = sbr.rel target = $region3
    $region8: #{mha_self_attention.1} parent=1 // loop_exit
      _
    %2058 = vsyncpa [#allocation3], 1
    %s2059 = scalar_lea.sflag [#allocation3], 1
    %2060 = vsyncpa %s2059, 1

</llo_original>
